<compile_context>
chip_gen: v5e
topology: v5e:2x2
jax: 0.10.0
libtpu: 0.0.40
codegen_flags: <defaults>
</compile_context>

<pallas_src>
import math

import jax
import jax.numpy as jnp
from jax.experimental import pallas as pl
from jax.experimental.pallas import tpu as pltpu

# ---- config (HLmConfig fields used by HLmGenerator), small test sizes ----
VOCAB = 11         # vocab_size
H = 32             # hidden_size
HD = 16            # attention_head_size
NH = 2             # num_attention_heads
QKV = HD * NH
MLP = 64           # mlp_size
Z = 8              # z_size
L = 2              # num_layers
B = 2              # batch
S = 8              # max_sequence_length / seq_len
EPS = 1e-5         # norm_eps
ROPE_BASE = 10000.0
Z_SCALE = math.sqrt(1.0 / (Z * L))           # np.sqrt(1 / (z_size * num_layers))
SOFTPLUS_SHIFT = math.log(math.e - 1.0)      # np.log(np.e - 1)
INV_SQRT_D = 1.0 / math.sqrt(HD)

D_UP = 2 * Z + 3 * QKV + 2 * MLP             # 240: natural fused-up width
D_UP_USED = 2 * MLP + 5 * QKV + 2 * Z        # 304: with folded q@rot / k@rot columns
D_UP_P = 384                                 # padded to a multiple of 128
D_DOWN = Z + QKV + MLP                       # 104: natural fused-down width
D_DOWN_P = 128                               # padded to a multiple of 128
H_P = 128                                    # lane-dense down output width
OUT_W = 128                                  # lane-dense fused output width (4*Z=32 used)

# column offsets inside the reordered, padded up projection
OFF_GATE = 0
OFF_VAL = MLP                  # 64
OFF_Q = 2 * MLP                # 128  (pre-scaled by 1/sqrt(HD))
OFF_K = 2 * MLP + QKV          # 160
OFF_V = 2 * MLP + 2 * QKV      # 192
OFF_QR = 2 * MLP + 3 * QKV     # 224  (q @ rot, pre-scaled by 1/sqrt(HD))
OFF_KR = 2 * MLP + 4 * QKV     # 256  (k @ rot)
OFF_ZP = 2 * MLP + 5 * QKV     # 288  (pre-scaled by Z_SCALE)


def _softplus(x):
    # stable softplus without log1p (keeps the Mosaic lowering simple)
    return jnp.maximum(x, 0.0) + jnp.log(1.0 + jnp.exp(-jnp.abs(x)))


def _silu(x):
    return x * (1.0 / (1.0 + jnp.exp(-x)))


def hlm_generator_kernel(
    mask_ref,    # (B, S)             f32
    noise_ref,   # (L, B, S, Z)       f32
    h0_ref,      # (B, S, H)          f32  input-module embeddings
    wup_ref,     # (L, H, D_UP_P)     bf16 [gate|val|q|k|v|q@rot|k@rot|zp|pad]
    wdown_ref,   # (L, D_DOWN_P, H_P) bf16 rows [z|attn|mlp|pad], cols [H|pad]
    cond_ref,    # (L, 3, 2, H)       f32  [scale, bias, filter] x [mask=0, mask=1]
    const_ref,   # (S, 128)           f32  [cos(32) | sin(32) | causal_bias(8) | pad]
    out_ref,     # (L, B, S, OUT_W)   f32  [z | noise | mu | sigma | pad]
):
    m3 = mask_ref[...][..., None]                        # (B, S, 1)
    h = h0_ref[...].astype(jnp.float32)                  # (B, S, H) hidden carry

    # layer-invariant constants, hoisted out of the layer loop
    cos = const_ref[:, 0:QKV][None]                      # (1, S, QKV)
    sin = const_ref[:, QKV:2 * QKV][None]                # (1, S, QKV)
    abias = const_ref[:, 2 * QKV:2 * QKV + S][None]      # (1, S, S) causal bias
    out_pad = jnp.zeros((B, S, OUT_W - 4 * Z), jnp.float32)
    down_pad = jnp.zeros((B, S, D_DOWN_P - D_DOWN), jnp.float32)

    for l in range(L):   # static, unrolled layer loop (L = 2)
        # ConditionalIO embeddings: column 0 = mask=0 row, column 1 = mask=1 row
        cl = cond_ref[l]                                 # (3, 2, H)
        scale = cl[0, 0].reshape(1, 1, H) + m3 * (cl[0, 1] - cl[0, 0]).reshape(1, 1, H)
        bias = cl[1, 0].reshape(1, 1, H) + m3 * (cl[1, 1] - cl[1, 0]).reshape(1, 1, H)
        filt = cl[2, 0].reshape(1, 1, H) + m3 * (cl[2, 1] - cl[2, 0]).reshape(1, 1, H)

        # ConditionalIO.enter: bias + (1 + scale) * LayerNorm(h)  (no affine)
        mean = jnp.mean(h, axis=-1, keepdims=True)
        var = jnp.mean(jnp.square(h - mean), axis=-1, keepdims=True)
        xn = (h - mean) * jax.lax.rsqrt(var + EPS)
        x_in = bias + (1.0 + scale) * xn                 # (B, S, H)

        # FusedLinear "up": one bf16 matmul over (B*S, H), f32 accumulation, split.
        up = jnp.dot(x_in.reshape(B * S, H).astype(jnp.bfloat16), wup_ref[l],
                     preferred_element_type=jnp.float32).reshape(B, S, D_UP_P)

        gate = up[..., OFF_GATE:OFF_GATE + MLP]
        val = up[..., OFF_VAL:OFF_VAL + MLP]
        q = up[..., OFF_Q:OFF_Q + QKV]                   # already * 1/sqrt(HD)
        k = up[..., OFF_K:OFF_K + QKV]
        v = up[..., OFF_V:OFF_V + QKV]
        q_rot = up[..., OFF_QR:OFF_QR + QKV]             # (x Wq) rot, * 1/sqrt(HD)
        k_rot = up[..., OFF_KR:OFF_KR + QKV]             # (x Wk) rot
        zp = up[..., OFF_ZP:OFF_ZP + 2 * Z]              # already * Z_SCALE

        # latent parameters (mask applied before the softplus shift, as in the ref)
        zp = m3 * zp
        mu = zp[..., :Z]
        sigma = _softplus(zp[..., Z:] + SOFTPLUS_SHIFT)
        noise = noise_ref[l] * m3                        # masked noise (ref returns this)
        z = mu + sigma * noise

        # RoPE (rope_fraction = 1); rotate_half folded into the up weights.
        q = q * cos + q_rot * sin
        k = k * cos + k_rot * sin

        # RotaryAttention, batched over B per head (scores in f32).
        # TODO(synk): RotaryAttention internals not given in the spec; assumed
        # causal softmax attention, use_register path omitted.
        heads = []
        for hh in range(NH):
            sl = slice(hh * HD, (hh + 1) * HD)
            s = jnp.einsum('bqd,bkd->bqk', q[..., sl], k[..., sl],
                           preferred_element_type=jnp.float32) + abias
            s = s - jnp.max(s, axis=-1, keepdims=True)
            p = jnp.exp(s)
            p = p * pl.reciprocal(jnp.sum(p, axis=-1, keepdims=True), approx=True)
            heads.append(jnp.einsum('bqk,bkd->bqd', p, v[..., sl],
                                    preferred_element_type=jnp.float32))
        attn = jnp.concatenate(heads, axis=-1)           # (B, S, QKV)

        # GLU mlp (hidden_act = silu)
        mlp_out = _silu(gate) * val                      # (B, S, MLP)

        # FusedLinear "down": concat (padded to 128 lanes), one bf16 matmul at N=128.
        dcat = jnp.concatenate([z, attn, mlp_out, down_pad], axis=-1)  # (B, S, 128)
        y = jnp.dot(dcat.reshape(B * S, D_DOWN_P).astype(jnp.bfloat16), wdown_ref[l],
                    preferred_element_type=jnp.float32)[:, :H].reshape(B, S, H)

        # ConditionalIO.exit
        h = h + filt * y

        # lane-dense fused per-layer output: [z | noise | mu | sigma | pad]
        out_ref[l] = jnp.concatenate([z, noise, mu, sigma, out_pad], axis=-1)


def hlm_generator(prepped, input_ids, mask, noise):
    """noise: (B, S, L, Z). Returns (zs, noises, mus, sigmas), each (B, S, L, Z)."""
    # HLmGeneratorInput: where(mask, embs[0], embs[ids + 1])   (plain-JAX glue)
    tok = jnp.where(mask, 0, input_ids + 1)
    h0 = prepped["embs"][tok]                            # (B, S, H)
    mask_f = mask.astype(jnp.float32)                    # (B, S)
    noise_l = jnp.transpose(noise, (2, 0, 1, 3))         # (L, B, S, Z)

    packed = pl.pallas_call(
        hlm_generator_kernel,
        out_shape=jax.ShapeDtypeStruct((L, B, S, OUT_W), jnp.float32),
        in_specs=[pl.BlockSpec(memory_space=pltpu.MemorySpace.VMEM)] * 7,
        out_specs=pl.BlockSpec(memory_space=pltpu.MemorySpace.VMEM),
    )(mask_f, noise_l, h0, prepped["w_up"], prepped["w_down"],
      prepped["cond"], prepped["consts"])

    packed = jnp.transpose(packed, (1, 2, 0, 3))         # (B, S, L, OUT_W)
    zs = packed[..., 0 * Z:1 * Z]
    noises = packed[..., 1 * Z:2 * Z]
    mus = packed[..., 2 * Z:3 * Z]
    sigmas = packed[..., 3 * Z:4 * Z]
    return zs, noises, mus, sigmas


def init_params(key):
    """Deterministic synthetic parameter init (shapes from HLmGenerator.__init__)."""
    ks = jax.random.split(key, 4)
    embs = 0.02 * jax.random.normal(ks[0], (1 + VOCAB, H), jnp.float32)
    # FusedLinear up: natural column order [2Z zp | q | k | v | gate | val]
    w_up = 0.02 * jax.random.normal(ks[1], (L, H, D_UP), jnp.float32)
    # FusedLinear down: natural row order [z | attn | mlp]
    w_down = 0.02 * jax.random.normal(ks[2], (L, D_DOWN, H), jnp.float32)
    # ConditionalIO scale/bias/filter Embedding(2, H) per layer: [scale, bias, filter]
    cond = 0.1 * jax.random.normal(ks[3], (L, 3, 2, H), jnp.float32)
    return dict(embs=embs, w_up=w_up, w_down=w_down, cond=cond)


def _rot_matrix():
    """rotate_half(x) == x @ rot (per head), block-diagonal over heads."""
    half = HD // 2
    rh = jnp.zeros((HD, HD), jnp.float32)
    rh = rh.at[jnp.arange(half), jnp.arange(half) + half].set(1.0)
    rh = rh.at[jnp.arange(half) + half, jnp.arange(half)].set(-1.0)
    return jnp.kron(jnp.eye(NH, dtype=jnp.float32), rh)                   # (QKV, QKV)


def prepare_params(params):
    """Kernel-facing prep: reorder/pad/bf16-cast weights, fold rotate_half and
    scalar scales into the up projection, and pack RoPE/causal tables into one
    lane-aligned constant slab (all done once, outside the kernel)."""
    w_up = params["w_up"]                                  # (L, H, 240)
    zp_w = w_up[:, :, :2 * Z]
    q_w = w_up[:, :, 2 * Z:2 * Z + QKV]
    k_w = w_up[:, :, 2 * Z + QKV:2 * Z + 2 * QKV]
    v_w = w_up[:, :, 2 * Z + 2 * QKV:2 * Z + 3 * QKV]
    gate_w = w_up[:, :, 2 * Z + 3 * QKV:2 * Z + 3 * QKV + MLP]
    val_w = w_up[:, :, 2 * Z + 3 * QKV + MLP:]

    rot = _rot_matrix()
    qs_w = q_w * INV_SQRT_D
    qrot_w = (q_w @ rot) * INV_SQRT_D
    krot_w = k_w @ rot
    zps_w = zp_w * Z_SCALE
    up_pad = jnp.zeros((L, H, D_UP_P - D_UP_USED), jnp.float32)
    w_up_p = jnp.concatenate(
        [gate_w, val_w, qs_w, k_w, v_w, qrot_w, krot_w, zps_w, up_pad],
        axis=-1).astype(jnp.bfloat16)                      # (L, H, 384)

    w_down_p = jnp.zeros((L, D_DOWN_P, H_P), jnp.float32)
    w_down_p = w_down_p.at[:, :D_DOWN, :H].set(params["w_down"])
    w_down_p = w_down_p.astype(jnp.bfloat16)               # (L, 128, 128)

    # RoPE tables (rope_fraction = 1, position_scale = 1), tiled per head.
    half = HD // 2
    inv_freq = ROPE_BASE ** (-jnp.arange(0, half, dtype=jnp.float32) * 2.0 / HD)
    ang = jnp.arange(S, dtype=jnp.float32)[:, None] * inv_freq[None, :]   # (S, HD/2)
    cos = jnp.concatenate([jnp.cos(ang), jnp.cos(ang)], axis=-1)          # (S, HD)
    sin = jnp.concatenate([jnp.sin(ang), jnp.sin(ang)], axis=-1)
    cos_q = jnp.tile(cos, (1, NH))                                        # (S, QKV)
    sin_q = jnp.tile(sin, (1, NH))
    r = jnp.arange(S)[:, None]
    c = jnp.arange(S)[None, :]
    attn_bias = jnp.where(r >= c, 0.0, -1e30).astype(jnp.float32)         # (S, S)

    consts = jnp.zeros((S, 128), jnp.float32)
    consts = consts.at[:, 0:QKV].set(cos_q)
    consts = consts.at[:, QKV:2 * QKV].set(sin_q)
    consts = consts.at[:, 2 * QKV:2 * QKV + S].set(attn_bias)

    return dict(embs=params["embs"], cond=params["cond"],
                w_up=w_up_p, w_down=w_down_p, consts=consts)


def hlm_generator_ref(params, input_ids, mask, noise):
    """Pure-JAX f32 reference mirroring the PyTorch forward (noise path only)."""
    # TODO(synk): z-given path and hitch_z not implemented (generation uses noise).
    tok = jnp.where(mask, 0, input_ids + 1)
    h = params["embs"][tok].astype(jnp.float32)
    mi = mask.astype(jnp.int32)
    m3 = mask.astype(jnp.float32)[..., None]
    half = HD // 2
    inv_freq = ROPE_BASE ** (-jnp.arange(0, half, dtype=jnp.float32) * 2.0 / HD)
    ang = jnp.arange(S, dtype=jnp.float32)[:, None] * inv_freq[None, :]
    cos = jnp.concatenate([jnp.cos(ang), jnp.cos(ang)], -1)               # (S, HD)
    sin = jnp.concatenate([jnp.sin(ang), jnp.sin(ang)], -1)
    causal = jnp.where(jnp.arange(S)[:, None] >= jnp.arange(S)[None, :], 0.0, -1e30)

    def rope(x):
        xh = x.reshape(B, S, NH, HD)
        xr = jnp.concatenate([-xh[..., half:], xh[..., :half]], -1)
        return (xh * cos[None, :, None, :] + xr * sin[None, :, None, :]).reshape(B, S, QKV)

    zs, noises, mus, sigmas = [], [], [], []
    for l in range(L):
        cond = params["cond"][l]
        scale, bias, filt = cond[0][mi], cond[1][mi], cond[2][mi]         # (B, S, H)
        mean = h.mean(-1, keepdims=True)
        var = jnp.mean((h - mean) ** 2, -1, keepdims=True)
        x_in = bias + (1.0 + scale) * ((h - mean) / jnp.sqrt(var + EPS))
        up = x_in @ params["w_up"][l]
        zp = m3 * Z_SCALE * up[..., :2 * Z]
        q = up[..., 2 * Z:2 * Z + QKV]
        k = up[..., 2 * Z + QKV:2 * Z + 2 * QKV]
        v = up[..., 2 * Z + 2 * QKV:2 * Z + 3 * QKV]
        gate = up[..., 2 * Z + 3 * QKV:2 * Z + 3 * QKV + MLP]
        val = up[..., 2 * Z + 3 * QKV + MLP:]
        mu = zp[..., :Z]
        sigma = jax.nn.softplus(zp[..., Z:] + SOFTPLUS_SHIFT)
        nz = noise[:, :, l] * m3
        z = mu + sigma * nz
        qr, kr = rope(q), rope(k)
        outs = []
        for hh in range(NH):
            sl = slice(hh * HD, (hh + 1) * HD)
            s = jnp.einsum('bqd,bkd->bqk', qr[..., sl], kr[..., sl]) * INV_SQRT_D
            p = jax.nn.softmax(s + causal[None], axis=-1)
            outs.append(jnp.einsum('bqk,bkd->bqd', p, v[..., sl]))
        attn = jnp.concatenate(outs, -1)
        mlp_out = jax.nn.silu(gate) * val
        y = jnp.concatenate([z, attn, mlp_out], -1) @ params["w_down"][l]
        h = h + filt * y
        zs.append(z); noises.append(nz); mus.append(mu); sigmas.append(sigma)
    st = lambda xs: jnp.stack(xs, axis=2)
    return st(zs), st(noises), st(mus), st(sigmas)


if __name__ == "__main__":
    key = jax.random.PRNGKey(0)
    kp, ki, km, kn = jax.random.split(key, 4)
    params = init_params(kp)
    prepped = prepare_params(params)

    input_ids = jax.random.randint(ki, (B, S), 0, VOCAB, dtype=jnp.int32)
    mask = jax.random.bernoulli(km, 0.5, (B, S))
    noise = jax.random.normal(kn, (B, S, L, Z), jnp.float32)

    run = jax.jit(hlm_generator)
    zs, noises, mus, sigmas = run(prepped, input_ids, mask, noise)
    jax.block_until_ready((zs, noises, mus, sigmas))

    assert zs.shape == (B, S, L, Z) and noises.shape == (B, S, L, Z)
    assert mus.shape == (B, S, L, Z) and sigmas.shape == (B, S, L, Z)

    # tolerance check vs. pure-JAX f32 reference (bf16 MXU weights + approx recip)
    rz, rn, rmu, rsig = hlm_generator_ref(params, input_ids, mask, noise)
    for got, want in ((zs, rz), (noises, rn), (mus, rmu), (sigmas, rsig)):
        assert jnp.allclose(got, want, rtol=5e-2, atol=5e-2), \
            float(jnp.max(jnp.abs(got - want)))

    print("KERNEL_OK")
</pallas_src>

<mosaic_0001>
module attributes {stable_mosaic.version = 11 : i64} {
  func.func @hlm_generator_kernel(%arg0: memref<2x8xf32, #tpu.memory_space<vmem>>, %arg1: memref<2x2x8x8xf32, #tpu.memory_space<vmem>>, %arg2: memref<2x8x32xf32, #tpu.memory_space<vmem>>, %arg3: memref<2x32x384xbf16, #tpu.memory_space<vmem>>, %arg4: memref<2x128x128xbf16, #tpu.memory_space<vmem>>, %arg5: memref<2x3x2x32xf32, #tpu.memory_space<vmem>>, %arg6: memref<8x128xf32, #tpu.memory_space<vmem>>, %arg7: memref<2x2x8x128xf32, #tpu.memory_space<vmem>>) attributes {dimension_semantics = [], scalar_prefetch = 0 : i64, scratch_operands = 0 : i64, tpu.core_type = #tpu.core_type<tc>} {
    %c0 = arith.constant 0 : index
    %c0_0 = arith.constant 0 : index
    %0 = vector.load %arg0[%c0, %c0_0] : memref<2x8xf32, #tpu.memory_space<vmem>>, vector<2x8xf32>
    %1 = vector.shape_cast %0 : vector<2x8xf32> to vector<2x8x1xf32>
    %c0_1 = arith.constant 0 : index
    %c0_2 = arith.constant 0 : index
    %c0_3 = arith.constant 0 : index
    %2 = vector.load %arg2[%c0_1, %c0_2, %c0_3] : memref<2x8x32xf32, #tpu.memory_space<vmem>>, vector<2x8x32xf32>
    %c0_4 = arith.constant 0 : index
    %c0_5 = arith.constant 0 : index
    %3 = vector.load %arg6[%c0_4, %c0_5] : memref<8x128xf32, #tpu.memory_space<vmem>>, vector<8x32xf32>
    %4 = vector.shape_cast %3 : vector<8x32xf32> to vector<1x8x32xf32>
    %c0_6 = arith.constant 0 : index
    %c32 = arith.constant 32 : index
    %5 = vector.load %arg6[%c0_6, %c32] : memref<8x128xf32, #tpu.memory_space<vmem>>, vector<8x32xf32>
    %6 = vector.shape_cast %5 : vector<8x32xf32> to vector<1x8x32xf32>
    %c0_7 = arith.constant 0 : index
    %c64 = arith.constant 64 : index
    %7 = vector.load %arg6[%c0_7, %c64] : memref<8x128xf32, #tpu.memory_space<vmem>>, vector<8x8xf32>
    %8 = vector.shape_cast %7 : vector<8x8xf32> to vector<1x8x8xf32>
    %cst = arith.constant 0.000000e+00 : f32
    %9 = vector.broadcast %cst : f32 to vector<2x8x96xf32>
    %cst_8 = arith.constant 0.000000e+00 : f32
    %10 = vector.broadcast %cst_8 : f32 to vector<2x8x24xf32>
    %c0_9 = arith.constant 0 : index
    %c0_10 = arith.constant 0 : index
    %c0_11 = arith.constant 0 : index
    %c0_12 = arith.constant 0 : index
    %11 = vector.load %arg5[%c0_9, %c0_10, %c0_11, %c0_12] : memref<2x3x2x32xf32, #tpu.memory_space<vmem>>, vector<1x3x2x32xf32>
    %12 = vector.shape_cast %11 : vector<1x3x2x32xf32> to vector<3x2x32xf32>
    %13 = vector.extract_strided_slice %12 {offsets = [0, 0, 0], sizes = [1, 1, 32], strides = [1, 1, 1]} : vector<3x2x32xf32> to vector<1x1x32xf32>
    %14 = vector.shape_cast %13 : vector<1x1x32xf32> to vector<32xf32>
    %15 = vector.shape_cast %14 : vector<32xf32> to vector<1x1x32xf32>
    %16 = vector.extract_strided_slice %12 {offsets = [0, 1, 0], sizes = [1, 1, 32], strides = [1, 1, 1]} : vector<3x2x32xf32> to vector<1x1x32xf32>
    %17 = vector.shape_cast %16 : vector<1x1x32xf32> to vector<32xf32>
    %18 = vector.extract_strided_slice %12 {offsets = [0, 0, 0], sizes = [1, 1, 32], strides = [1, 1, 1]} : vector<3x2x32xf32> to vector<1x1x32xf32>
    %19 = vector.shape_cast %18 : vector<1x1x32xf32> to vector<32xf32>
    %20 = arith.subf %17, %19 : vector<32xf32>
    %21 = vector.shape_cast %20 : vector<32xf32> to vector<1x1x32xf32>
    %22 = vector.broadcast %1 : vector<2x8x1xf32> to vector<2x8x32xf32>
    %23 = vector.broadcast %21 : vector<1x1x32xf32> to vector<2x8x32xf32>
    %24 = arith.mulf %22, %23 : vector<2x8x32xf32>
    %25 = vector.broadcast %15 : vector<1x1x32xf32> to vector<2x8x32xf32>
    %26 = arith.addf %25, %24 : vector<2x8x32xf32>
    %27 = vector.extract_strided_slice %12 {offsets = [1, 0, 0], sizes = [1, 1, 32], strides = [1, 1, 1]} : vector<3x2x32xf32> to vector<1x1x32xf32>
    %28 = vector.shape_cast %27 : vector<1x1x32xf32> to vector<32xf32>
    %29 = vector.shape_cast %28 : vector<32xf32> to vector<1x1x32xf32>
    %30 = vector.extract_strided_slice %12 {offsets = [1, 1, 0], sizes = [1, 1, 32], strides = [1, 1, 1]} : vector<3x2x32xf32> to vector<1x1x32xf32>
    %31 = vector.shape_cast %30 : vector<1x1x32xf32> to vector<32xf32>
    %32 = vector.extract_strided_slice %12 {offsets = [1, 0, 0], sizes = [1, 1, 32], strides = [1, 1, 1]} : vector<3x2x32xf32> to vector<1x1x32xf32>
    %33 = vector.shape_cast %32 : vector<1x1x32xf32> to vector<32xf32>
    %34 = arith.subf %31, %33 : vector<32xf32>
    %35 = vector.shape_cast %34 : vector<32xf32> to vector<1x1x32xf32>
    %36 = vector.broadcast %1 : vector<2x8x1xf32> to vector<2x8x32xf32>
    %37 = vector.broadcast %35 : vector<1x1x32xf32> to vector<2x8x32xf32>
    %38 = arith.mulf %36, %37 : vector<2x8x32xf32>
    %39 = vector.broadcast %29 : vector<1x1x32xf32> to vector<2x8x32xf32>
    %40 = arith.addf %39, %38 : vector<2x8x32xf32>
    %41 = vector.extract_strided_slice %12 {offsets = [2, 0, 0], sizes = [1, 1, 32], strides = [1, 1, 1]} : vector<3x2x32xf32> to vector<1x1x32xf32>
    %42 = vector.shape_cast %41 : vector<1x1x32xf32> to vector<32xf32>
    %43 = vector.shape_cast %42 : vector<32xf32> to vector<1x1x32xf32>
    %44 = vector.extract_strided_slice %12 {offsets = [2, 1, 0], sizes = [1, 1, 32], strides = [1, 1, 1]} : vector<3x2x32xf32> to vector<1x1x32xf32>
    %45 = vector.shape_cast %44 : vector<1x1x32xf32> to vector<32xf32>
    %46 = vector.extract_strided_slice %12 {offsets = [2, 0, 0], sizes = [1, 1, 32], strides = [1, 1, 1]} : vector<3x2x32xf32> to vector<1x1x32xf32>
    %47 = vector.shape_cast %46 : vector<1x1x32xf32> to vector<32xf32>
    %48 = arith.subf %45, %47 : vector<32xf32>
    %49 = vector.shape_cast %48 : vector<32xf32> to vector<1x1x32xf32>
    %50 = vector.broadcast %1 : vector<2x8x1xf32> to vector<2x8x32xf32>
    %51 = vector.broadcast %49 : vector<1x1x32xf32> to vector<2x8x32xf32>
    %52 = arith.mulf %50, %51 : vector<2x8x32xf32>
    %53 = vector.broadcast %43 : vector<1x1x32xf32> to vector<2x8x32xf32>
    %54 = arith.addf %53, %52 : vector<2x8x32xf32>
    %cst_13 = arith.constant dense<0.000000e+00> : vector<2x8xf32>
    %55 = vector.multi_reduction <add>, %2, %cst_13 [2] : vector<2x8x32xf32> to vector<2x8xf32>
    %56 = vector.shape_cast %55 : vector<2x8xf32> to vector<2x8x1xf32>
    %cst_14 = arith.constant 3.200000e+01 : f32
    %57 = vector.broadcast %cst_14 : f32 to vector<2x8x1xf32>
    %58 = arith.divf %56, %57 : vector<2x8x1xf32>
    %59 = vector.broadcast %58 : vector<2x8x1xf32> to vector<2x8x32xf32>
    %60 = arith.subf %2, %59 : vector<2x8x32xf32>
    %61 = arith.mulf %60, %60 : vector<2x8x32xf32>
    %cst_15 = arith.constant dense<0.000000e+00> : vector<2x8xf32>
    %62 = vector.multi_reduction <add>, %61, %cst_15 [2] : vector<2x8x32xf32> to vector<2x8xf32>
    %63 = vector.shape_cast %62 : vector<2x8xf32> to vector<2x8x1xf32>
    %cst_16 = arith.constant 3.200000e+01 : f32
    %64 = vector.broadcast %cst_16 : f32 to vector<2x8x1xf32>
    %65 = arith.divf %63, %64 : vector<2x8x1xf32>
    %66 = vector.broadcast %58 : vector<2x8x1xf32> to vector<2x8x32xf32>
    %67 = arith.subf %2, %66 : vector<2x8x32xf32>
    %cst_17 = arith.constant 9.99999974E-6 : f32
    %68 = vector.broadcast %cst_17 : f32 to vector<2x8x1xf32>
    %69 = arith.addf %65, %68 : vector<2x8x1xf32>
    %70 = math.rsqrt %69 : vector<2x8x1xf32>
    %71 = vector.broadcast %70 : vector<2x8x1xf32> to vector<2x8x32xf32>
    %72 = arith.mulf %67, %71 : vector<2x8x32xf32>
    %cst_18 = arith.constant 1.000000e+00 : f32
    %73 = vector.broadcast %cst_18 : f32 to vector<2x8x32xf32>
    %74 = arith.addf %73, %26 : vector<2x8x32xf32>
    %75 = arith.mulf %74, %72 : vector<2x8x32xf32>
    %76 = arith.addf %40, %75 : vector<2x8x32xf32>
    %77 = vector.shape_cast %76 : vector<2x8x32xf32> to vector<16x32xf32>
    %78 = arith.truncf %77 : vector<16x32xf32> to vector<16x32xbf16>
    %c0_19 = arith.constant 0 : index
    %c0_20 = arith.constant 0 : index
    %c0_21 = arith.constant 0 : index
    %79 = vector.load %arg3[%c0_19, %c0_20, %c0_21] : memref<2x32x384xbf16, #tpu.memory_space<vmem>>, vector<1x32x384xbf16>
    %80 = vector.shape_cast %79 : vector<1x32x384xbf16> to vector<32x384xbf16>
    %cst_22 = arith.constant dense<0.000000e+00> : vector<16x384xf32>
    %81 = tpu.matmul %78, %80, %cst_22 {dimension_numbers = #tpu.dot_dimension_numbers<[1], [0], [0], [1], [0, 0, 1, 1], [], []>} : vector<16x32xbf16>, vector<32x384xbf16>, vector<16x384xf32> -> vector<16x384xf32>
    %82 = vector.shape_cast %81 : vector<16x384xf32> to vector<2x8x384xf32>
    %83 = vector.extract_strided_slice %82 {offsets = [0, 0, 0], sizes = [2, 8, 64], strides = [1, 1, 1]} : vector<2x8x384xf32> to vector<2x8x64xf32>
    %84 = vector.extract_strided_slice %82 {offsets = [0, 0, 64], sizes = [2, 8, 64], strides = [1, 1, 1]} : vector<2x8x384xf32> to vector<2x8x64xf32>
    %85 = vector.extract_strided_slice %82 {offsets = [0, 0, 128], sizes = [2, 8, 32], strides = [1, 1, 1]} : vector<2x8x384xf32> to vector<2x8x32xf32>
    %86 = vector.extract_strided_slice %82 {offsets = [0, 0, 160], sizes = [2, 8, 32], strides = [1, 1, 1]} : vector<2x8x384xf32> to vector<2x8x32xf32>
    %87 = vector.extract_strided_slice %82 {offsets = [0, 0, 192], sizes = [2, 8, 32], strides = [1, 1, 1]} : vector<2x8x384xf32> to vector<2x8x32xf32>
    %88 = vector.extract_strided_slice %82 {offsets = [0, 0, 224], sizes = [2, 8, 32], strides = [1, 1, 1]} : vector<2x8x384xf32> to vector<2x8x32xf32>
    %89 = vector.extract_strided_slice %82 {offsets = [0, 0, 256], sizes = [2, 8, 32], strides = [1, 1, 1]} : vector<2x8x384xf32> to vector<2x8x32xf32>
    %90 = vector.extract_strided_slice %82 {offsets = [0, 0, 288], sizes = [2, 8, 16], strides = [1, 1, 1]} : vector<2x8x384xf32> to vector<2x8x16xf32>
    %91 = vector.broadcast %1 : vector<2x8x1xf32> to vector<2x8x16xf32>
    %92 = arith.mulf %91, %90 : vector<2x8x16xf32>
    %93 = vector.extract_strided_slice %92 {offsets = [0, 0, 0], sizes = [2, 8, 8], strides = [1, 1, 1]} : vector<2x8x16xf32> to vector<2x8x8xf32>
    %94 = vector.extract_strided_slice %92 {offsets = [0, 0, 8], sizes = [2, 8, 8], strides = [1, 1, 1]} : vector<2x8x16xf32> to vector<2x8x8xf32>
    %cst_23 = arith.constant 0.541324854 : f32
    %95 = vector.broadcast %cst_23 : f32 to vector<2x8x8xf32>
    %96 = arith.addf %94, %95 : vector<2x8x8xf32>
    %cst_24 = arith.constant 0.000000e+00 : f32
    %97 = vector.broadcast %cst_24 : f32 to vector<2x8x8xf32>
    %98 = arith.maximumf %96, %97 : vector<2x8x8xf32>
    %99 = math.absf %96 : vector<2x8x8xf32>
    %cst_25 = arith.constant 0.000000e+00 : f32
    %100 = vector.broadcast %cst_25 : f32 to vector<2x8x8xf32>
    %101 = arith.subf %100, %99 : vector<2x8x8xf32>
    %102 = math.exp %101 : vector<2x8x8xf32>
    %cst_26 = arith.constant 1.000000e+00 : f32
    %103 = vector.broadcast %cst_26 : f32 to vector<2x8x8xf32>
    %104 = arith.addf %103, %102 : vector<2x8x8xf32>
    %105 = math.log %104 : vector<2x8x8xf32>
    %106 = arith.addf %98, %105 : vector<2x8x8xf32>
    %c0_27 = arith.constant 0 : index
    %c0_28 = arith.constant 0 : index
    %c0_29 = arith.constant 0 : index
    %c0_30 = arith.constant 0 : index
    %107 = vector.load %arg1[%c0_27, %c0_28, %c0_29, %c0_30] : memref<2x2x8x8xf32, #tpu.memory_space<vmem>>, vector<1x2x8x8xf32>
    %108 = vector.shape_cast %107 : vector<1x2x8x8xf32> to vector<2x8x8xf32>
    %109 = vector.broadcast %1 : vector<2x8x1xf32> to vector<2x8x8xf32>
    %110 = arith.mulf %108, %109 : vector<2x8x8xf32>
    %111 = arith.mulf %106, %110 : vector<2x8x8xf32>
    %112 = arith.addf %93, %111 : vector<2x8x8xf32>
    %113 = vector.broadcast %4 : vector<1x8x32xf32> to vector<2x8x32xf32>
    %114 = arith.mulf %85, %113 : vector<2x8x32xf32>
    %115 = vector.broadcast %6 : vector<1x8x32xf32> to vector<2x8x32xf32>
    %116 = arith.mulf %88, %115 : vector<2x8x32xf32>
    %117 = arith.addf %114, %116 : vector<2x8x32xf32>
    %118 = vector.broadcast %4 : vector<1x8x32xf32> to vector<2x8x32xf32>
    %119 = arith.mulf %86, %118 : vector<2x8x32xf32>
    %120 = vector.broadcast %6 : vector<1x8x32xf32> to vector<2x8x32xf32>
    %121 = arith.mulf %89, %120 : vector<2x8x32xf32>
    %122 = arith.addf %119, %121 : vector<2x8x32xf32>
    %123 = vector.extract_strided_slice %117 {offsets = [0, 0, 0], sizes = [2, 8, 16], strides = [1, 1, 1]} : vector<2x8x32xf32> to vector<2x8x16xf32>
    %124 = vector.extract_strided_slice %122 {offsets = [0, 0, 0], sizes = [2, 8, 16], strides = [1, 1, 1]} : vector<2x8x32xf32> to vector<2x8x16xf32>
    "tpu.trace_start"() <{level = 10 : i32, message = "bqd,bkd->bqk"}> : () -> ()
    %cst_31 = arith.constant dense<0.000000e+00> : vector<2x8x8xf32>
    %125 = tpu.matmul %123, %124, %cst_31 {dimension_numbers = #tpu.dot_dimension_numbers<[2], [2], [1], [1], [0, 0, 0, 1, 1, 1], [0], [0]>} : vector<2x8x16xf32>, vector<2x8x16xf32>, vector<2x8x8xf32> -> vector<2x8x8xf32>
    "tpu.trace_stop"() : () -> ()
    %126 = vector.broadcast %8 : vector<1x8x8xf32> to vector<2x8x8xf32>
    %127 = arith.addf %125, %126 : vector<2x8x8xf32>
    %cst_32 = arith.constant dense<0xFF800000> : vector<2x8xf32>
    %128 = vector.multi_reduction <maximumf>, %127, %cst_32 [2] : vector<2x8x8xf32> to vector<2x8xf32>
    %129 = vector.shape_cast %128 : vector<2x8xf32> to vector<2x8x1xf32>
    %130 = vector.broadcast %129 : vector<2x8x1xf32> to vector<2x8x8xf32>
    %131 = arith.subf %127, %130 : vector<2x8x8xf32>
    %132 = math.exp %131 : vector<2x8x8xf32>
    %cst_33 = arith.constant dense<0.000000e+00> : vector<2x8xf32>
    %133 = vector.multi_reduction <add>, %132, %cst_33 [2] : vector<2x8x8xf32> to vector<2x8xf32>
    %134 = vector.shape_cast %133 : vector<2x8xf32> to vector<2x8x1xf32>
    %135 = tpu.reciprocal %134 {approx = true} : vector<2x8x1xf32> -> vector<2x8x1xf32>
    %136 = vector.broadcast %135 : vector<2x8x1xf32> to vector<2x8x8xf32>
    %137 = arith.mulf %132, %136 : vector<2x8x8xf32>
    %138 = vector.extract_strided_slice %87 {offsets = [0, 0, 0], sizes = [2, 8, 16], strides = [1, 1, 1]} : vector<2x8x32xf32> to vector<2x8x16xf32>
    "tpu.trace_start"() <{level = 10 : i32, message = "bqk,bkd->bqd"}> : () -> ()
    %cst_34 = arith.constant dense<0.000000e+00> : vector<2x8x16xf32>
    %139 = tpu.matmul %137, %138, %cst_34 {dimension_numbers = #tpu.dot_dimension_numbers<[2], [1], [1], [2], [0, 0, 0, 1, 1, 2], [0], [0]>} : vector<2x8x8xf32>, vector<2x8x16xf32>, vector<2x8x16xf32> -> vector<2x8x16xf32>
    "tpu.trace_stop"() : () -> ()
    %140 = vector.extract_strided_slice %117 {offsets = [0, 0, 16], sizes = [2, 8, 16], strides = [1, 1, 1]} : vector<2x8x32xf32> to vector<2x8x16xf32>
    %141 = vector.extract_strided_slice %122 {offsets = [0, 0, 16], sizes = [2, 8, 16], strides = [1, 1, 1]} : vector<2x8x32xf32> to vector<2x8x16xf32>
    "tpu.trace_start"() <{level = 10 : i32, message = "bqd,bkd->bqk"}> : () -> ()
    %cst_35 = arith.constant dense<0.000000e+00> : vector<2x8x8xf32>
    %142 = tpu.matmul %140, %141, %cst_35 {dimension_numbers = #tpu.dot_dimension_numbers<[2], [2], [1], [1], [0, 0, 0, 1, 1, 1], [0], [0]>} : vector<2x8x16xf32>, vector<2x8x16xf32>, vector<2x8x8xf32> -> vector<2x8x8xf32>
    "tpu.trace_stop"() : () -> ()
    %143 = vector.broadcast %8 : vector<1x8x8xf32> to vector<2x8x8xf32>
    %144 = arith.addf %142, %143 : vector<2x8x8xf32>
    %cst_36 = arith.constant dense<0xFF800000> : vector<2x8xf32>
    %145 = vector.multi_reduction <maximumf>, %144, %cst_36 [2] : vector<2x8x8xf32> to vector<2x8xf32>
    %146 = vector.shape_cast %145 : vector<2x8xf32> to vector<2x8x1xf32>
    %147 = vector.broadcast %146 : vector<2x8x1xf32> to vector<2x8x8xf32>
    %148 = arith.subf %144, %147 : vector<2x8x8xf32>
    %149 = math.exp %148 : vector<2x8x8xf32>
    %cst_37 = arith.constant dense<0.000000e+00> : vector<2x8xf32>
    %150 = vector.multi_reduction <add>, %149, %cst_37 [2] : vector<2x8x8xf32> to vector<2x8xf32>
    %151 = vector.shape_cast %150 : vector<2x8xf32> to vector<2x8x1xf32>
    %152 = tpu.reciprocal %151 {approx = true} : vector<2x8x1xf32> -> vector<2x8x1xf32>
    %153 = vector.broadcast %152 : vector<2x8x1xf32> to vector<2x8x8xf32>
    %154 = arith.mulf %149, %153 : vector<2x8x8xf32>
    %155 = vector.extract_strided_slice %87 {offsets = [0, 0, 16], sizes = [2, 8, 16], strides = [1, 1, 1]} : vector<2x8x32xf32> to vector<2x8x16xf32>
    "tpu.trace_start"() <{level = 10 : i32, message = "bqk,bkd->bqd"}> : () -> ()
    %cst_38 = arith.constant dense<0.000000e+00> : vector<2x8x16xf32>
    %156 = tpu.matmul %154, %155, %cst_38 {dimension_numbers = #tpu.dot_dimension_numbers<[2], [1], [1], [2], [0, 0, 0, 1, 1, 2], [0], [0]>} : vector<2x8x8xf32>, vector<2x8x16xf32>, vector<2x8x16xf32> -> vector<2x8x16xf32>
    "tpu.trace_stop"() : () -> ()
    %157 = tpu.concatenate %139, %156 in 2 : vector<2x8x16xf32>, vector<2x8x16xf32> -> vector<2x8x32xf32>
    %cst_39 = arith.constant 0.000000e+00 : f32
    %158 = vector.broadcast %cst_39 : f32 to vector<2x8x64xf32>
    %159 = arith.subf %158, %83 : vector<2x8x64xf32>
    %160 = math.exp %159 : vector<2x8x64xf32>
    %cst_40 = arith.constant 1.000000e+00 : f32
    %161 = vector.broadcast %cst_40 : f32 to vector<2x8x64xf32>
    %162 = arith.addf %161, %160 : vector<2x8x64xf32>
    %cst_41 = arith.constant 1.000000e+00 : f32
    %163 = vector.broadcast %cst_41 : f32 to vector<2x8x64xf32>
    %164 = arith.divf %163, %162 : vector<2x8x64xf32>
    %165 = arith.mulf %83, %164 : vector<2x8x64xf32>
    %166 = arith.mulf %165, %84 : vector<2x8x64xf32>
    %167 = tpu.concatenate %112, %157, %166, %10 in 2 : vector<2x8x8xf32>, vector<2x8x32xf32>, vector<2x8x64xf32>, vector<2x8x24xf32> -> vector<2x8x128xf32>
    %168 = vector.shape_cast %167 : vector<2x8x128xf32> to vector<16x128xf32>
    %169 = arith.truncf %168 : vector<16x128xf32> to vector<16x128xbf16>
    %c0_42 = arith.constant 0 : index
    %c0_43 = arith.constant 0 : index
    %c0_44 = arith.constant 0 : index
    %170 = vector.load %arg4[%c0_42, %c0_43, %c0_44] : memref<2x128x128xbf16, #tpu.memory_space<vmem>>, vector<1x128x128xbf16>
    %171 = vector.shape_cast %170 : vector<1x128x128xbf16> to vector<128x128xbf16>
    %cst_45 = arith.constant dense<0.000000e+00> : vector<16x128xf32>
    %172 = tpu.matmul %169, %171, %cst_45 {dimension_numbers = #tpu.dot_dimension_numbers<[1], [0], [0], [1], [0, 0, 1, 1], [], []>} : vector<16x128xbf16>, vector<128x128xbf16>, vector<16x128xf32> -> vector<16x128xf32>
    %173 = vector.extract_strided_slice %172 {offsets = [0, 0], sizes = [16, 32], strides = [1, 1]} : vector<16x128xf32> to vector<16x32xf32>
    %174 = vector.shape_cast %173 : vector<16x32xf32> to vector<2x8x32xf32>
    %175 = arith.mulf %54, %174 : vector<2x8x32xf32>
    %176 = arith.addf %2, %175 : vector<2x8x32xf32>
    %177 = tpu.concatenate %112, %110, %93, %106, %9 in 2 : vector<2x8x8xf32>, vector<2x8x8xf32>, vector<2x8x8xf32>, vector<2x8x8xf32>, vector<2x8x96xf32> -> vector<2x8x128xf32>
    %c0_46 = arith.constant 0 : index
    %c0_47 = arith.constant 0 : index
    %c0_48 = arith.constant 0 : index
    %c0_49 = arith.constant 0 : index
    %178 = vector.load %arg7[%c0_46, %c0_47, %c0_48, %c0_49] : memref<2x2x8x128xf32, #tpu.memory_space<vmem>>, vector<1x2x8x128xf32>
    %179 = vector.shape_cast %178 : vector<1x2x8x128xf32> to vector<2x8x128xf32>
    %180 = vector.shape_cast %177 : vector<2x8x128xf32> to vector<1x2x8x128xf32>
    tpu.vector_store %arg7[%c0_46, %c0_47, %c0_48, %c0_49], %180 {strides = array<i32>} : memref<2x2x8x128xf32, #tpu.memory_space<vmem>>, vector<1x2x8x128xf32>,
    %c1 = arith.constant 1 : index
    %c0_50 = arith.constant 0 : index
    %c0_51 = arith.constant 0 : index
    %c0_52 = arith.constant 0 : index
    %181 = vector.load %arg5[%c1, %c0_50, %c0_51, %c0_52] : memref<2x3x2x32xf32, #tpu.memory_space<vmem>>, vector<1x3x2x32xf32>
    %182 = vector.shape_cast %181 : vector<1x3x2x32xf32> to vector<3x2x32xf32>
    %183 = vector.extract_strided_slice %182 {offsets = [0, 0, 0], sizes = [1, 1, 32], strides = [1, 1, 1]} : vector<3x2x32xf32> to vector<1x1x32xf32>
    %184 = vector.shape_cast %183 : vector<1x1x32xf32> to vector<32xf32>
    %185 = vector.shape_cast %184 : vector<32xf32> to vector<1x1x32xf32>
    %186 = vector.extract_strided_slice %182 {offsets = [0, 1, 0], sizes = [1, 1, 32], strides = [1, 1, 1]} : vector<3x2x32xf32> to vector<1x1x32xf32>
    %187 = vector.shape_cast %186 : vector<1x1x32xf32> to vector<32xf32>
    %188 = vector.extract_strided_slice %182 {offsets = [0, 0, 0], sizes = [1, 1, 32], strides = [1, 1, 1]} : vector<3x2x32xf32> to vector<1x1x32xf32>
    %189 = vector.shape_cast %188 : vector<1x1x32xf32> to vector<32xf32>
    %190 = arith.subf %187, %189 : vector<32xf32>
    %191 = vector.shape_cast %190 : vector<32xf32> to vector<1x1x32xf32>
    %192 = vector.broadcast %1 : vector<2x8x1xf32> to vector<2x8x32xf32>
    %193 = vector.broadcast %191 : vector<1x1x32xf32> to vector<2x8x32xf32>
    %194 = arith.mulf %192, %193 : vector<2x8x32xf32>
    %195 = vector.broadcast %185 : vector<1x1x32xf32> to vector<2x8x32xf32>
    %196 = arith.addf %195, %194 : vector<2x8x32xf32>
    %197 = vector.extract_strided_slice %182 {offsets = [1, 0, 0], sizes = [1, 1, 32], strides = [1, 1, 1]} : vector<3x2x32xf32> to vector<1x1x32xf32>
    %198 = vector.shape_cast %197 : vector<1x1x32xf32> to vector<32xf32>
    %199 = vector.shape_cast %198 : vector<32xf32> to vector<1x1x32xf32>
    %200 = vector.extract_strided_slice %182 {offsets = [1, 1, 0], sizes = [1, 1, 32], strides = [1, 1, 1]} : vector<3x2x32xf32> to vector<1x1x32xf32>
    %201 = vector.shape_cast %200 : vector<1x1x32xf32> to vector<32xf32>
    %202 = vector.extract_strided_slice %182 {offsets = [1, 0, 0], sizes = [1, 1, 32], strides = [1, 1, 1]} : vector<3x2x32xf32> to vector<1x1x32xf32>
    %203 = vector.shape_cast %202 : vector<1x1x32xf32> to vector<32xf32>
    %204 = arith.subf %201, %203 : vector<32xf32>
    %205 = vector.shape_cast %204 : vector<32xf32> to vector<1x1x32xf32>
    %206 = vector.broadcast %1 : vector<2x8x1xf32> to vector<2x8x32xf32>
    %207 = vector.broadcast %205 : vector<1x1x32xf32> to vector<2x8x32xf32>
    %208 = arith.mulf %206, %207 : vector<2x8x32xf32>
    %209 = vector.broadcast %199 : vector<1x1x32xf32> to vector<2x8x32xf32>
    %210 = arith.addf %209, %208 : vector<2x8x32xf32>
    %cst_53 = arith.constant dense<0.000000e+00> : vector<2x8xf32>
    %211 = vector.multi_reduction <add>, %176, %cst_53 [2] : vector<2x8x32xf32> to vector<2x8xf32>
    %212 = vector.shape_cast %211 : vector<2x8xf32> to vector<2x8x1xf32>
    %cst_54 = arith.constant 3.200000e+01 : f32
    %213 = vector.broadcast %cst_54 : f32 to vector<2x8x1xf32>
    %214 = arith.divf %212, %213 : vector<2x8x1xf32>
    %215 = vector.broadcast %214 : vector<2x8x1xf32> to vector<2x8x32xf32>
    %216 = arith.subf %176, %215 : vector<2x8x32xf32>
    %217 = arith.mulf %216, %216 : vector<2x8x32xf32>
    %cst_55 = arith.constant dense<0.000000e+00> : vector<2x8xf32>
    %218 = vector.multi_reduction <add>, %217, %cst_55 [2] : vector<2x8x32xf32> to vector<2x8xf32>
    %219 = vector.shape_cast %218 : vector<2x8xf32> to vector<2x8x1xf32>
    %cst_56 = arith.constant 3.200000e+01 : f32
    %220 = vector.broadcast %cst_56 : f32 to vector<2x8x1xf32>
    %221 = arith.divf %219, %220 : vector<2x8x1xf32>
    %222 = vector.broadcast %214 : vector<2x8x1xf32> to vector<2x8x32xf32>
    %223 = arith.subf %176, %222 : vector<2x8x32xf32>
    %cst_57 = arith.constant 9.99999974E-6 : f32
    %224 = vector.broadcast %cst_57 : f32 to vector<2x8x1xf32>
    %225 = arith.addf %221, %224 : vector<2x8x1xf32>
    %226 = math.rsqrt %225 : vector<2x8x1xf32>
    %227 = vector.broadcast %226 : vector<2x8x1xf32> to vector<2x8x32xf32>
    %228 = arith.mulf %223, %227 : vector<2x8x32xf32>
    %cst_58 = arith.constant 1.000000e+00 : f32
    %229 = vector.broadcast %cst_58 : f32 to vector<2x8x32xf32>
    %230 = arith.addf %229, %196 : vector<2x8x32xf32>
    %231 = arith.mulf %230, %228 : vector<2x8x32xf32>
    %232 = arith.addf %210, %231 : vector<2x8x32xf32>
    %233 = vector.shape_cast %232 : vector<2x8x32xf32> to vector<16x32xf32>
    %234 = arith.truncf %233 : vector<16x32xf32> to vector<16x32xbf16>
    %c1_59 = arith.constant 1 : index
    %c0_60 = arith.constant 0 : index
    %c0_61 = arith.constant 0 : index
    %235 = vector.load %arg3[%c1_59, %c0_60, %c0_61] : memref<2x32x384xbf16, #tpu.memory_space<vmem>>, vector<1x32x384xbf16>
    %236 = vector.shape_cast %235 : vector<1x32x384xbf16> to vector<32x384xbf16>
    %cst_62 = arith.constant dense<0.000000e+00> : vector<16x384xf32>
    %237 = tpu.matmul %234, %236, %cst_62 {dimension_numbers = #tpu.dot_dimension_numbers<[1], [0], [0], [1], [0, 0, 1, 1], [], []>} : vector<16x32xbf16>, vector<32x384xbf16>, vector<16x384xf32> -> vector<16x384xf32>
    %238 = vector.shape_cast %237 : vector<16x384xf32> to vector<2x8x384xf32>
    %239 = vector.extract_strided_slice %238 {offsets = [0, 0, 288], sizes = [2, 8, 16], strides = [1, 1, 1]} : vector<2x8x384xf32> to vector<2x8x16xf32>
    %240 = vector.broadcast %1 : vector<2x8x1xf32> to vector<2x8x16xf32>
    %241 = arith.mulf %240, %239 : vector<2x8x16xf32>
    %242 = vector.extract_strided_slice %241 {offsets = [0, 0, 0], sizes = [2, 8, 8], strides = [1, 1, 1]} : vector<2x8x16xf32> to vector<2x8x8xf32>
    %243 = vector.extract_strided_slice %241 {offsets = [0, 0, 8], sizes = [2, 8, 8], strides = [1, 1, 1]} : vector<2x8x16xf32> to vector<2x8x8xf32>
    %cst_63 = arith.constant 0.541324854 : f32
    %244 = vector.broadcast %cst_63 : f32 to vector<2x8x8xf32>
    %245 = arith.addf %243, %244 : vector<2x8x8xf32>
    %cst_64 = arith.constant 0.000000e+00 : f32
    %246 = vector.broadcast %cst_64 : f32 to vector<2x8x8xf32>
    %247 = arith.maximumf %245, %246 : vector<2x8x8xf32>
    %248 = math.absf %245 : vector<2x8x8xf32>
    %cst_65 = arith.constant 0.000000e+00 : f32
    %249 = vector.broadcast %cst_65 : f32 to vector<2x8x8xf32>
    %250 = arith.subf %249, %248 : vector<2x8x8xf32>
    %251 = math.exp %250 : vector<2x8x8xf32>
    %cst_66 = arith.constant 1.000000e+00 : f32
    %252 = vector.broadcast %cst_66 : f32 to vector<2x8x8xf32>
    %253 = arith.addf %252, %251 : vector<2x8x8xf32>
    %254 = math.log %253 : vector<2x8x8xf32>
    %255 = arith.addf %247, %254 : vector<2x8x8xf32>
    %c1_67 = arith.constant 1 : index
    %c0_68 = arith.constant 0 : index
    %c0_69 = arith.constant 0 : index
    %c0_70 = arith.constant 0 : index
    %256 = vector.load %arg1[%c1_67, %c0_68, %c0_69, %c0_70] : memref<2x2x8x8xf32, #tpu.memory_space<vmem>>, vector<1x2x8x8xf32>
    %257 = vector.shape_cast %256 : vector<1x2x8x8xf32> to vector<2x8x8xf32>
    %258 = vector.broadcast %1 : vector<2x8x1xf32> to vector<2x8x8xf32>
    %259 = arith.mulf %257, %258 : vector<2x8x8xf32>
    %260 = arith.mulf %255, %259 : vector<2x8x8xf32>
    %261 = arith.addf %242, %260 : vector<2x8x8xf32>
    %262 = tpu.concatenate %261, %259, %242, %255, %9 in 2 : vector<2x8x8xf32>, vector<2x8x8xf32>, vector<2x8x8xf32>, vector<2x8x8xf32>, vector<2x8x96xf32> -> vector<2x8x128xf32>
    %c1_71 = arith.constant 1 : index
    %c0_72 = arith.constant 0 : index
    %c0_73 = arith.constant 0 : index
    %c0_74 = arith.constant 0 : index
    %263 = vector.load %arg7[%c1_71, %c0_72, %c0_73, %c0_74] : memref<2x2x8x128xf32, #tpu.memory_space<vmem>>, vector<1x2x8x128xf32>
    %264 = vector.shape_cast %263 : vector<1x2x8x128xf32> to vector<2x8x128xf32>
    %265 = vector.shape_cast %262 : vector<2x8x128xf32> to vector<1x2x8x128xf32>
    tpu.vector_store %arg7[%c1_71, %c0_72, %c0_73, %c0_74], %265 {strides = array<i32>} : memref<2x2x8x128xf32, #tpu.memory_space<vmem>>, vector<1x2x8x128xf32>,
    return
  }
}

</mosaic_0001>

<llo_original>
// kernel: hlm_generator.1
$region0: #{hlm_generator.1}
  #allocation0 [shape = 'u32[]', space=smem, size = 0x4, offset = 0x4, fixed_abs, tag = 'smem constant byte address 0x4 - core index']
  #allocation1 [shape = 'u32[72,128]{1,0:T(1,128)}', space=vmem, size = 0x9000, scoped, tag = 'internal scratch']
  %s0 = inlined_call_operand.vmem [shape: f32[2,8], index: 0, kind: input, shape index: {}]
  %s1 = inlined_call_operand.vmem [shape: f32[2,2,8,8], index: 1, kind: input, shape index: {}]
  %s2 = inlined_call_operand.vmem [shape: f32[2,8,32], index: 2, kind: input, shape index: {}]
  %s3 = inlined_call_operand.hbm [shape: bf16[2,32,384], index: 3, kind: input, shape index: {}]
  %s4 = inlined_call_operand.vmem [shape: bf16[2,128,128], index: 4, kind: input, shape index: {}]
  %s5 = inlined_call_operand.vmem [shape: f32[2,3,2,32], index: 5, kind: input, shape index: {}]
  %s6 = inlined_call_operand.vmem [shape: f32[8,128], index: 6, kind: input, shape index: {}]
  %s7 = inlined_call_operand.vmem [shape: f32[2,2,8,128], index: 7, kind: output, shape index: {}]
  %s8 = sld [smem:[#allocation0]]
  $region42: #{hlm_generator.1} parent=0
    _
  %s10 = ssub.s32 1, %s8
  %s11 = scalar_select 0, %s10, %s8
  $region1: #{hlm_generator.1} parent=0
    #allocation2 [shape = 'u8[49152]{0}', space=vmem, size = 0xc000, scoped, tag = 'input window, operand 3, single buffered']
    #allocation3 [shape = 's32[1]{0}', space=sflag, size = 0x4, scoped, tag = 'scoped memory for hlm_generator.1']
    %12 = vsyncpa [#allocation3], 0
    // Predicated region
    $region2: #{hlm_generator.1} parent=1 // pred_check
      _
    $region3: #{hlm_generator.1} parent=1 // pred_check_branch
      %14 = sbr.rel (0) target = $region5
    $region4: #{hlm_generator.1} parent=1 // pred_region
      _
    $region5: #{hlm_generator.1} parent=1 // pred_fallthru
      _
    // Predicated region
    $region6: #{hlm_generator.1} parent=1 // pred_check
      _
    $region7: #{hlm_generator.1} parent=1 // pred_check_branch
      %16 = sbr.rel (0) target = $region9
    $region8: #{hlm_generator.1} parent=1 // pred_region
      _
    $region9: #{hlm_generator.1} parent=1 // pred_fallthru
      _
    // Predicated region
    $region10: #{hlm_generator.1} parent=1 // pred_check
      _
    $region11: #{hlm_generator.1} parent=1 // pred_check_branch
      %18 = sbr.rel (0) target = $region13
    $region12: #{hlm_generator.1} parent=1 // pred_region
      _
    $region13: #{hlm_generator.1} parent=1 // pred_fallthru
      _
    // Predicated region
    $region14: #{hlm_generator.1} parent=1 // pred_check
      _
    $region15: #{hlm_generator.1} parent=1 // pred_check_branch
      %20 = sbr.rel (0) target = $region17
    $region16: #{hlm_generator.1} parent=1 // pred_region
      %22 = vsyncadd [#allocation3], 0
      %s23 = sshll.u32 %s3, 4
      %s24 = int_to_ptr.hbm [resolvable:$true] %s23
      %s25 = sshll.u32 [#allocation2], 4
      %s26 = int_to_ptr.vmem [resolvable:$true] %s25
      %31 = dma.hbm_to_vmem [thread:$0]  %s24, 1536, %s26, [#allocation3], 192, 192, 12
    $region17: #{hlm_generator.1} parent=1 // pred_fallthru
      _
    // Predicated region
    $region18: #{hlm_generator.1} parent=1 // pred_check
      _
    $region19: #{hlm_generator.1} parent=1 // pred_check_branch
      %33 = sbr.rel (0) target = $region21
    $region20: #{hlm_generator.1} parent=1 // pred_region
      _
    $region21: #{hlm_generator.1} parent=1 // pred_fallthru
      _
    // Predicated region
    $region22: #{hlm_generator.1} parent=1 // pred_check
      _
    $region23: #{hlm_generator.1} parent=1 // pred_check_branch
      %35 = sbr.rel (0) target = $region25
    $region24: #{hlm_generator.1} parent=1 // pred_region
      _
    $region25: #{hlm_generator.1} parent=1 // pred_fallthru
      _
    // Predicated region
    $region26: #{hlm_generator.1} parent=1 // pred_check
      _
    $region27: #{hlm_generator.1} parent=1 // pred_check_branch
      %37 = sbr.rel (0) target = $region29
    $region28: #{hlm_generator.1} parent=1 // pred_region
      _
    $region29: #{hlm_generator.1} parent=1 // pred_fallthru
      _
    // Predicated region
    $region30: #{hlm_generator.1} parent=1 // pred_check
      _
    $region31: #{hlm_generator.1} parent=1 // pred_check_branch
      %39 = sbr.rel (0) target = $region33
    $region32: #{hlm_generator.1} parent=1 // pred_region
      %41 = dma.done [#allocation3], 1536
    $region33: #{hlm_generator.1} parent=1 // pred_fallthru
      _
    %v43 = vld [vmem:[%s0] sm:$0x3]
    %v44 = vperm.slane %v43, 0
    %v45 = vlaneseq
    %v46 = vshrl.u32 %v45, 7
    %48 = vset.pattern.permute.xlu0 %v46
    %49 = vperm.xlu0 %48, %v44
    %v50 = vpop.permute.xlu0 %49
    %v51 = vperm.slane %v43, 1
    %v52 = vlaneseq
    %v53 = vshrl.u32 %v52, 7
    %55 = vset.pattern.permute.xlu0 %v53
    %56 = vperm.xlu0 %55, %v51
    %v57 = vpop.permute.xlu0 %56
    %v58 = vld [vmem:[%s2] sm:$0xff]
    %v59 = vld [vmem:[%s2 + $0x8] sm:$0xff]
    %v60 = vld [vmem:[%s6] sm:$0xff]
    %v61 = vld [vmem:[%s5] sm:$0x3]
    %v62 = vld [vmem:[%s5 + $0x2] sm:$0x3]
    %v63 = vld [vmem:[%s5 + $0x4] sm:$0x3]
    %v65 = vrot.slane %v61, 7
    %v67 = vsub.f32 %v61, %v65
    %v68 = vperm.slane %v67, 1
    %v69 = vmul.f32 %v50, %v68
    %v70 = vmul.f32 %v57, %v68
    %v71 = vperm.slane %v61, 0
    %v72 = vadd.f32 %v71, %v69
    %v73 = vadd.f32 %v71, %v70
    %v75 = vrot.slane %v62, 7
    %v77 = vsub.f32 %v62, %v75
    %v78 = vperm.slane %v77, 1
    %v79 = vmul.f32 %v50, %v78
    %v80 = vmul.f32 %v57, %v78
    %v81 = vperm.slane %v62, 0
    %v82 = vadd.f32 %v81, %v79
    %v83 = vadd.f32 %v81, %v80
    %v85 = vrot.slane %v63, 7
    %v87 = vsub.f32 %v63, %v85
    %v88 = vperm.slane %v87, 1
    %v89 = vmul.f32 %v50, %v88
    %v90 = vmul.f32 %v57, %v88
    %v91 = vperm.slane %v63, 0
    %v92 = vadd.f32 %v91, %v89
    %v93 = vadd.f32 %v91, %v90
    %vm94 = vcmask 261120
    %v95 = vsel %vm94, %v58, 0.0
    %96 = vadd.xlane.f32.xlu0 %v95
    %v97 = vpop.xlane.xlu0 %96
    %v98 = vsel %vm94, %v59, 0.0
    %99 = vadd.xlane.f32.xlu0 %v98
    %v100 = vpop.xlane.xlu0 %99
    %v101 = vrcp.pop 32.0
    %v102 = vmul.f32 32.0, %v101
    %v103 = vsub.f32 1.0, %v102
    %v104 = vmul.f32 %v101, %v103
    %v105 = vadd.f32 %v101, %v104
    %vm106 = vweird.f32 %v101
    %v107 = vsel %vm106, %v101, %v105
    %v108 = vmul.f32 %v97, %v107
    %v109 = vmul.f32 %v100, %v107
    %v110 = vsub.f32 %v58, %v108
    %v111 = vsub.f32 %v59, %v109
    %v112 = vmul.f32 %v110, %v110
    %v113 = vmul.f32 %v111, %v111
    %v114 = vsel %vm94, %v112, 0.0
    %115 = vadd.xlane.f32.xlu0 %v114
    %v116 = vpop.xlane.xlu0 %115
    %v117 = vsel %vm94, %v113, 0.0
    %118 = vadd.xlane.f32.xlu0 %v117
    %v119 = vpop.xlane.xlu0 %118
    %v120 = vmul.f32 %v116, %v107
    %v121 = vmul.f32 %v119, %v107
    %v122 = vadd.f32 %v120, 1e-05
    %v123 = vadd.f32 %v121, 1e-05
    %v124 = vrsqrt.pop %v122
    %v125 = vmul.f32 %v124, %v122
    %v126 = vmul.f32 %v125, %v124
    %v127 = vmul.f32 0.5, %v126
    %v128 = vsub.f32 1.5, %v127
    %v129 = vmul.f32 %v124, %v128
    %vm130 = vweird.f32 %v122
    %vm131 = vweird.f32 %v124
    %vm132 = vmor %vm130, %vm131
    %v133 = vsel %vm132, %v124, %v129
    %v134 = vrsqrt.pop %v123
    %v135 = vmul.f32 %v134, %v123
    %v136 = vmul.f32 %v135, %v134
    %v137 = vmul.f32 0.5, %v136
    %v138 = vsub.f32 1.5, %v137
    %v139 = vmul.f32 %v134, %v138
    %vm140 = vweird.f32 %v123
    %vm141 = vweird.f32 %v134
    %vm142 = vmor %vm140, %vm141
    %v143 = vsel %vm142, %v134, %v139
    %v144 = vmul.f32 %v110, %v133
    %v145 = vmul.f32 %v111, %v143
    %v146 = vadd.f32 %v72, 1.0
    %v147 = vadd.f32 %v73, 1.0
    %v148 = vmul.f32 %v146, %v144
    %v149 = vmul.f32 %v147, %v145
    %v150 = vadd.f32 %v82, %v148
    %v151 = vadd.f32 %v83, %v149
    %v152 = vpack.c.bf16 %v151, %v150
    %v153 = vld [vmem:[#allocation2] sm:$0xff]
    %v154 = vld [vmem:[#allocation2 + $0x8] sm:$0xf]
    %v155 = vld [vmem:[#allocation2 + $0xc] sm:$0xff]
    %v156 = vld [vmem:[#allocation2 + $0x14] sm:$0xf]
    %v157 = vld [vmem:[#allocation2 + $0x18] sm:$0xff]
    %v158 = vld [vmem:[#allocation2 + $0x20] sm:$0xf]
    %v159 = vld [vmem:[#allocation2 + $0x24] sm:$0xff]
    %v160 = vld [vmem:[#allocation2 + $0x2c] sm:$0xf]
    %v169 = vunpack.c.l.b16 %v153
    %v170 = vunpack.c.h.b16 %v153
    %v171 = vunpack.c.l.b16 %v154
    %v172 = vunpack.c.l.b16 %v155
    %v173 = vunpack.c.h.b16 %v155
    %v174 = vunpack.c.l.b16 %v156
    %v175 = vunpack.c.l.b16 %v157
    %v176 = vunpack.c.h.b16 %v157
    %v177 = vunpack.c.l.b16 %v158
    %v178 = vunpack.c.l.b16 %v159
    %v179 = vunpack.c.h.b16 %v159
    %v180 = vunpack.c.l.b16 %v160
    %v181 = vpack.c.b16 %v172, %v169
    %v182 = vpack.c.b16 %v173, %v170
    %v183 = vpack.c.b16 %v174, %v171
    %v184 = vpack.c.b16 %v178, %v175
    %v185 = vpack.c.b16 %v179, %v176
    %v186 = vpack.c.b16 %v180, %v177
    %v194 = vsel %vm94, %v152, 0
    %196 = vmatpush.bf16.msra.mxu0 0
    %197 = vmatpush.bf16.msra.mxu0 0
    %198 = vmatpush.bf16.msra.mxu0 0
    %199 = vmatpush.bf16.msra.mxu0 0
    %200 = vmatpush.bf16.msra.mxu0 0
    %201 = vmatpush.bf16.msra.mxu0 0
    %202 = vmatpush.bf16.msra.mxu0 %v184
    %203 = vmatpush.bf16.msra.mxu0 %v181
    %204 = vmatmul.bf16.gmra.mxu0 %v194
    %v205 = vpop.f32.mrf.mxu0
    %v206 = vadd.f32 0.0, %v205
    %v207 = vpop.f32.mrf.mxu0
    %v208 = vadd.f32 0.0, %v207
    %209 = vdwg.mxu0
    %210 = vmatpush.bf16.msra.mxu0 0
    %211 = vmatpush.bf16.msra.mxu0 0
    %212 = vmatpush.bf16.msra.mxu0 0
    %213 = vmatpush.bf16.msra.mxu0 0
    %214 = vmatpush.bf16.msra.mxu0 0
    %215 = vmatpush.bf16.msra.mxu0 0
    %216 = vmatpush.bf16.msra.mxu0 %v185
    %217 = vmatpush.bf16.msra.mxu0 %v182
    %218 = vmatmul.bf16.gmra.mxu0 %v194
    %v219 = vpop.f32.mrf.mxu0
    %v220 = vadd.f32 0.0, %v219
    %v221 = vpop.f32.mrf.mxu0
    %v222 = vadd.f32 0.0, %v221
    %223 = vdwg.mxu0
    %224 = vmatpush.bf16.msra.mxu0 0
    %225 = vmatpush.bf16.msra.mxu0 0
    %226 = vmatpush.bf16.msra.mxu0 0
    %227 = vmatpush.bf16.msra.mxu0 0
    %228 = vmatpush.bf16.msra.mxu0 0
    %229 = vmatpush.bf16.msra.mxu0 0
    %230 = vmatpush.bf16.msra.mxu0 %v186
    %231 = vmatpush.bf16.msra.mxu0 %v183
    %232 = vmatmul.bf16.gmra.mxu0 %v194
    %v233 = vpop.f32.mrf.mxu0
    %v234 = vadd.f32 0.0, %v233
    %v235 = vpop.f32.mrf.mxu0
    %v236 = vadd.f32 0.0, %v235
    %237 = vdwg.mxu0
    %v238 = vmul.f32 %v50, %v234
    %v239 = vmul.f32 %v57, %v236
    %v240 = vadd.f32 %v238, 0.54132485
    %v241 = vadd.f32 %v239, 0.54132485
    %v242 = vmax.f32 %v240, 0.0
    %v243 = vmax.f32 %v241, 0.0
    %v244 = vand.u32 2147483647, %v240
    %v245 = vand.u32 2147483647, %v241
    %v246 = vsub.f32 0.0, %v244
    %v247 = vsub.f32 0.0, %v245
    %v248 = vmul.f32 %v246, 1.442695
    %v249 = vpow.pop %v248
    %v250 = vmul.f32 %v247, 1.442695
    %v251 = vpow.pop %v250
    %v252 = vadd.f32 %v249, 1.0
    %v253 = vadd.f32 %v251, 1.0
    %v254 = vlog2.pop %v252
    %v255 = vmul.f32 %v254, 0.6931472
    %v256 = vlog2.pop %v253
    %v257 = vmul.f32 %v256, 0.6931472
    %v258 = vadd.f32 %v242, %v255
    %v259 = vadd.f32 %v243, %v257
    %v260 = vld [vmem:[%s1] sm:$0xff]
    %v261 = vld [vmem:[%s1 + $0x8] sm:$0xff]
    %v262 = vmul.f32 %v260, %v50
    %v263 = vmul.f32 %v261, %v57
    %266 = vrot.lane.b32.xlu0 %v262, 40
    %v267 = vpop.permute.xlu0 %266
    %268 = vrot.lane.b32.xlu0 %v263, 40
    %v269 = vpop.permute.xlu0 %268
    %v272 = vmul.f32 %v258, %v267
    %v273 = vmul.f32 %v259, %v269
    %276 = vrot.lane.b32.xlu0 %v272, 120
    %v277 = vpop.permute.xlu0 %276
    %278 = vrot.lane.b32.xlu0 %v273, 120
    %v279 = vpop.permute.xlu0 %278
    %v282 = vadd.f32 %v238, %v277
    %v283 = vadd.f32 %v239, %v279
    %v284 = vmul.f32 %v220, %v60
    %v285 = vmul.f32 %v222, %v60
    %287 = vrot.lane.b32.xlu0 %v60, 64
    %v288 = vpop.permute.xlu0 %287
    %v290 = vmul.f32 %v220, %v288
    %v291 = vmul.f32 %v222, %v288
    %294 = vrot.lane.b32.xlu0 %v290, 32
    %v295 = vpop.permute.xlu0 %294
    %296 = vrot.lane.b32.xlu0 %v291, 32
    %v297 = vpop.permute.xlu0 %296
    %v300 = vadd.f32 %v284, %v295
    %v301 = vadd.f32 %v285, %v297
    %302 = vrot.lane.b32.xlu0 %v60, 32
    %v303 = vpop.permute.xlu0 %302
    %v305 = vmul.f32 %v220, %v303
    %v306 = vmul.f32 %v222, %v303
    %307 = vrot.lane.b32.xlu0 %v60, 96
    %v308 = vpop.permute.xlu0 %307
    %v310 = vmul.f32 %v234, %v308
    %v311 = vmul.f32 %v236, %v308
    %314 = vrot.lane.b32.xlu0 %v310, 32
    %v315 = vpop.permute.xlu0 %314
    %316 = vrot.lane.b32.xlu0 %v311, 32
    %v317 = vpop.permute.xlu0 %316
    %v320 = vadd.f32 %v305, %v315
    %v321 = vadd.f32 %v306, %v317
    %323 = vrot.lane.b32.xlu0 %v320, 96
    %v324 = vpop.permute.xlu0 %323
    %vm325 = vcmask 130048
    %v327 = vsel %vm325, %v300, 0
    %v329 = vsel %vm325, %v324, 0
    %331 = vmatpush.xpose.msra.mxu0 0.0
    %332 = vmatpush.xpose.msra.mxu0 0.0
    %333 = vmatpush.xpose.msra.mxu0 0.0
    %334 = vmatpush.xpose.msra.mxu0 0.0
    %335 = vmatpush.xpose.msra.mxu0 0.0
    %336 = vmatpush.xpose.msra.mxu0 0.0
    %337 = vmatpush.xpose.msra.mxu0 0.0
    %338 = vmatpush.xpose.msra.mxu0 0.0
    %339 = vmatpush.xpose.msra.mxu0 0.0
    %340 = vmatpush.xpose.msra.mxu0 0.0
    %341 = vmatpush.xpose.msra.mxu0 0.0
    %342 = vmatpush.xpose.msra.mxu0 0.0
    %343 = vmatpush.xpose.msra.mxu0 0.0
    %344 = vmatpush.xpose.msra.mxu0 0.0
    %345 = vmatpush.xpose.msra.mxu0 0.0
    %346 = vmatpush.xpose.msra.mxu0 %v329
    %347 = vmatmul.f32.gmra.mxu0 %v327
    %v348 = vpop.f32.mrf.mxu0
    %v349 = vadd.f32 %v288, %v348
    %350 = vdwg.mxu0
    %352 = vrot.lane.b32.xlu0 %v321, 96
    %v353 = vpop.permute.xlu0 %352
    %v355 = vsel %vm325, %v301, 0
    %v357 = vsel %vm325, %v353, 0
    %359 = vmatpush.xpose.msra.mxu0 0.0
    %360 = vmatpush.xpose.msra.mxu0 0.0
    %361 = vmatpush.xpose.msra.mxu0 0.0
    %362 = vmatpush.xpose.msra.mxu0 0.0
    %363 = vmatpush.xpose.msra.mxu0 0.0
    %364 = vmatpush.xpose.msra.mxu0 0.0
    %365 = vmatpush.xpose.msra.mxu0 0.0
    %366 = vmatpush.xpose.msra.mxu0 0.0
    %367 = vmatpush.xpose.msra.mxu0 0.0
    %368 = vmatpush.xpose.msra.mxu0 0.0
    %369 = vmatpush.xpose.msra.mxu0 0.0
    %370 = vmatpush.xpose.msra.mxu0 0.0
    %371 = vmatpush.xpose.msra.mxu0 0.0
    %372 = vmatpush.xpose.msra.mxu0 0.0
    %373 = vmatpush.xpose.msra.mxu0 0.0
    %374 = vmatpush.xpose.msra.mxu0 %v357
    %375 = vmatmul.f32.gmra.mxu0 %v355
    %v376 = vpop.f32.mrf.mxu0
    %v377 = vadd.f32 %v288, %v376
    %378 = vdwg.mxu0
    %vm379 = vcmask 64512
    %v380 = vsel %vm379, %v349, -inf
    %381 = vmax.xlane.f32.xlu0 %v380
    %v382 = vpop.xlane.xlu0 %381
    %v383 = vsel %vm379, %v377, -inf
    %384 = vmax.xlane.f32.xlu0 %v383
    %v385 = vpop.xlane.xlu0 %384
    %v386 = vsub.f32 %v349, %v382
    %v387 = vsub.f32 %v377, %v385
    %v388 = vmul.f32 %v386, 1.442695
    %v389 = vpow.pop %v388
    %v390 = vmul.f32 %v387, 1.442695
    %v391 = vpow.pop %v390
    %v392 = vsel %vm379, %v389, 0.0
    %393 = vadd.xlane.f32.xlu0 %v392
    %v394 = vpop.xlane.xlu0 %393
    %v395 = vsel %vm379, %v391, 0.0
    %396 = vadd.xlane.f32.xlu0 %v395
    %v397 = vpop.xlane.xlu0 %396
    %v398 = vrcp.pop %v394
    %v399 = vrcp.pop %v397
    %v400 = vmul.f32 %v389, %v398
    %v401 = vmul.f32 %v391, %v399
    %403 = vrot.lane.b32.xlu0 %v220, 64
    %v404 = vpop.permute.xlu0 %403
    %v407 = vsel %vm379, %v400, 0
    %409 = vmatpush.msra.mxu0 0.0
    %410 = vmatpush.msra.mxu0 0.0
    %411 = vmatpush.msra.mxu0 0.0
    %412 = vmatpush.msra.mxu0 0.0
    %413 = vmatpush.msra.mxu0 0.0
    %414 = vmatpush.msra.mxu0 0.0
    %415 = vmatpush.msra.mxu0 0.0
    %416 = vmatpush.msra.mxu0 0.0
    %417 = vmatpush.msra.mxu0 0.0
    %418 = vmatpush.msra.mxu0 0.0
    %419 = vmatpush.msra.mxu0 0.0
    %420 = vmatpush.msra.mxu0 0.0
    %421 = vmatpush.msra.mxu0 0.0
    %422 = vmatpush.msra.mxu0 0.0
    %423 = vmatpush.msra.mxu0 0.0
    %424 = vmatpush.msra.mxu0 %v404
    %425 = vmatmul.f32.gmra.mxu0 %v407
    %v426 = vpop.f32.mrf.mxu0
    %v427 = vadd.f32 0.0, %v426
    %428 = vdwg.mxu0
    %430 = vrot.lane.b32.xlu0 %v222, 64
    %v431 = vpop.permute.xlu0 %430
    %v434 = vsel %vm379, %v401, 0
    %436 = vmatpush.msra.mxu0 0.0
    %437 = vmatpush.msra.mxu0 0.0
    %438 = vmatpush.msra.mxu0 0.0
    %439 = vmatpush.msra.mxu0 0.0
    %440 = vmatpush.msra.mxu0 0.0
    %441 = vmatpush.msra.mxu0 0.0
    %442 = vmatpush.msra.mxu0 0.0
    %443 = vmatpush.msra.mxu0 0.0
    %444 = vmatpush.msra.mxu0 0.0
    %445 = vmatpush.msra.mxu0 0.0
    %446 = vmatpush.msra.mxu0 0.0
    %447 = vmatpush.msra.mxu0 0.0
    %448 = vmatpush.msra.mxu0 0.0
    %449 = vmatpush.msra.mxu0 0.0
    %450 = vmatpush.msra.mxu0 0.0
    %451 = vmatpush.msra.mxu0 %v431
    %452 = vmatmul.f32.gmra.mxu0 %v434
    %v453 = vpop.f32.mrf.mxu0
    %v454 = vadd.f32 0.0, %v453
    %455 = vdwg.mxu0
    %456 = vrot.lane.b32.xlu0 %v300, 112
    %v457 = vpop.permute.xlu0 %456
    %458 = vrot.lane.b32.xlu0 %v320, 80
    %v459 = vpop.permute.xlu0 %458
    %v460 = vsel %vm325, %v457, 0
    %v462 = vsel %vm325, %v459, 0
    %464 = vmatpush.xpose.msra.mxu0 0.0
    %465 = vmatpush.xpose.msra.mxu0 0.0
    %466 = vmatpush.xpose.msra.mxu0 0.0
    %467 = vmatpush.xpose.msra.mxu0 0.0
    %468 = vmatpush.xpose.msra.mxu0 0.0
    %469 = vmatpush.xpose.msra.mxu0 0.0
    %470 = vmatpush.xpose.msra.mxu0 0.0
    %471 = vmatpush.xpose.msra.mxu0 0.0
    %472 = vmatpush.xpose.msra.mxu0 0.0
    %473 = vmatpush.xpose.msra.mxu0 0.0
    %474 = vmatpush.xpose.msra.mxu0 0.0
    %475 = vmatpush.xpose.msra.mxu0 0.0
    %476 = vmatpush.xpose.msra.mxu0 0.0
    %477 = vmatpush.xpose.msra.mxu0 0.0
    %478 = vmatpush.xpose.msra.mxu0 0.0
    %479 = vmatpush.xpose.msra.mxu0 %v462
    %480 = vmatmul.f32.gmra.mxu0 %v460
    %v481 = vpop.f32.mrf.mxu0
    %v482 = vadd.f32 %v288, %v481
    %483 = vdwg.mxu0
    %484 = vrot.lane.b32.xlu0 %v301, 112
    %v485 = vpop.permute.xlu0 %484
    %486 = vrot.lane.b32.xlu0 %v321, 80
    %v487 = vpop.permute.xlu0 %486
    %v488 = vsel %vm325, %v485, 0
    %v490 = vsel %vm325, %v487, 0
    %492 = vmatpush.xpose.msra.mxu0 0.0
    %493 = vmatpush.xpose.msra.mxu0 0.0
    %494 = vmatpush.xpose.msra.mxu0 0.0
    %495 = vmatpush.xpose.msra.mxu0 0.0
    %496 = vmatpush.xpose.msra.mxu0 0.0
    %497 = vmatpush.xpose.msra.mxu0 0.0
    %498 = vmatpush.xpose.msra.mxu0 0.0
    %499 = vmatpush.xpose.msra.mxu0 0.0
    %500 = vmatpush.xpose.msra.mxu0 0.0
    %501 = vmatpush.xpose.msra.mxu0 0.0
    %502 = vmatpush.xpose.msra.mxu0 0.0
    %503 = vmatpush.xpose.msra.mxu0 0.0
    %504 = vmatpush.xpose.msra.mxu0 0.0
    %505 = vmatpush.xpose.msra.mxu0 0.0
    %506 = vmatpush.xpose.msra.mxu0 0.0
    %507 = vmatpush.xpose.msra.mxu0 %v490
    %508 = vmatmul.f32.gmra.mxu0 %v488
    %v509 = vpop.f32.mrf.mxu0
    %v510 = vadd.f32 %v288, %v509
    %511 = vdwg.mxu0
    %v512 = vsel %vm379, %v482, -inf
    %513 = vmax.xlane.f32.xlu0 %v512
    %v514 = vpop.xlane.xlu0 %513
    %v515 = vsel %vm379, %v510, -inf
    %516 = vmax.xlane.f32.xlu0 %v515
    %v517 = vpop.xlane.xlu0 %516
    %v518 = vsub.f32 %v482, %v514
    %v519 = vsub.f32 %v510, %v517
    %v520 = vmul.f32 %v518, 1.442695
    %v521 = vpow.pop %v520
    %v522 = vmul.f32 %v519, 1.442695
    %v523 = vpow.pop %v522
    %v524 = vsel %vm379, %v521, 0.0
    %525 = vadd.xlane.f32.xlu0 %v524
    %v526 = vpop.xlane.xlu0 %525
    %v527 = vsel %vm379, %v523, 0.0
    %528 = vadd.xlane.f32.xlu0 %v527
    %v529 = vpop.xlane.xlu0 %528
    %v530 = vrcp.pop %v526
    %v531 = vrcp.pop %v529
    %v532 = vmul.f32 %v521, %v530
    %v533 = vmul.f32 %v523, %v531
    %534 = vrot.lane.b32.xlu0 %v220, 48
    %v535 = vpop.permute.xlu0 %534
    %v538 = vsel %vm379, %v532, 0
    %540 = vmatpush.msra.mxu0 0.0
    %541 = vmatpush.msra.mxu0 0.0
    %542 = vmatpush.msra.mxu0 0.0
    %543 = vmatpush.msra.mxu0 0.0
    %544 = vmatpush.msra.mxu0 0.0
    %545 = vmatpush.msra.mxu0 0.0
    %546 = vmatpush.msra.mxu0 0.0
    %547 = vmatpush.msra.mxu0 0.0
    %548 = vmatpush.msra.mxu0 0.0
    %549 = vmatpush.msra.mxu0 0.0
    %550 = vmatpush.msra.mxu0 0.0
    %551 = vmatpush.msra.mxu0 0.0
    %552 = vmatpush.msra.mxu0 0.0
    %553 = vmatpush.msra.mxu0 0.0
    %554 = vmatpush.msra.mxu0 0.0
    %555 = vmatpush.msra.mxu0 %v535
    %556 = vmatmul.f32.gmra.mxu0 %v538
    %v557 = vpop.f32.mrf.mxu0
    %v558 = vadd.f32 0.0, %v557
    %559 = vdwg.mxu0
    %560 = vrot.lane.b32.xlu0 %v222, 48
    %v561 = vpop.permute.xlu0 %560
    %v564 = vsel %vm379, %v533, 0
    %566 = vmatpush.msra.mxu0 0.0
    %567 = vmatpush.msra.mxu0 0.0
    %568 = vmatpush.msra.mxu0 0.0
    %569 = vmatpush.msra.mxu0 0.0
    %570 = vmatpush.msra.mxu0 0.0
    %571 = vmatpush.msra.mxu0 0.0
    %572 = vmatpush.msra.mxu0 0.0
    %573 = vmatpush.msra.mxu0 0.0
    %574 = vmatpush.msra.mxu0 0.0
    %575 = vmatpush.msra.mxu0 0.0
    %576 = vmatpush.msra.mxu0 0.0
    %577 = vmatpush.msra.mxu0 0.0
    %578 = vmatpush.msra.mxu0 0.0
    %579 = vmatpush.msra.mxu0 0.0
    %580 = vmatpush.msra.mxu0 0.0
    %581 = vmatpush.msra.mxu0 %v561
    %582 = vmatmul.f32.gmra.mxu0 %v564
    %v583 = vpop.f32.mrf.mxu0
    %v584 = vadd.f32 0.0, %v583
    %585 = vdwg.mxu0
    %588 = vrot.lane.b32.xlu0 %v558, 16
    %v589 = vpop.permute.xlu0 %588
    %590 = vrot.lane.b32.xlu0 %v584, 16
    %v591 = vpop.permute.xlu0 %590
    %v594 = vsel %vm325, %v427, %v589
    %v595 = vsel %vm325, %v454, %v591
    %v596 = vsub.f32 0.0, %v206
    %v597 = vsub.f32 0.0, %v208
    %v598 = vmul.f32 %v596, 1.442695
    %v599 = vpow.pop %v598
    %v600 = vmul.f32 %v597, 1.442695
    %v601 = vpow.pop %v600
    %v602 = vadd.f32 %v599, 1.0
    %v603 = vadd.f32 %v601, 1.0
    %v604 = vrcp.pop %v602
    %v605 = vmul.f32 %v602, %v604
    %v606 = vsub.f32 1.0, %v605
    %v607 = vmul.f32 %v604, %v606
    %v608 = vadd.f32 %v604, %v607
    %vm609 = vweird.f32 %v602
    %vm610 = vweird.f32 %v604
    %vm611 = vmor %vm609, %vm610
    %v612 = vsel %vm611, %v604, %v608
    %v613 = vand.u32 2147483647, %v602
    %vm614 = vcmp.eq.f32.partialorder %v613, 8.507059e+37
    %v615 = vand.u32 %v602, 2147483648
    %v616 = vor.u32 1.1754944e-38, %v615
    %v617 = vsel %vm614, %v616, %v612
    %v618 = vmul.f32 1.0, %v617
    %v619 = vrcp.pop %v603
    %v620 = vmul.f32 %v603, %v619
    %v621 = vsub.f32 1.0, %v620
    %v622 = vmul.f32 %v619, %v621
    %v623 = vadd.f32 %v619, %v622
    %vm624 = vweird.f32 %v603
    %vm625 = vweird.f32 %v619
    %vm626 = vmor %vm624, %vm625
    %v627 = vsel %vm626, %v619, %v623
    %v628 = vand.u32 2147483647, %v603
    %vm629 = vcmp.eq.f32.partialorder %v628, 8.507059e+37
    %v630 = vand.u32 %v603, 2147483648
    %v631 = vor.u32 1.1754944e-38, %v630
    %v632 = vsel %vm629, %v631, %v627
    %v633 = vmul.f32 1.0, %v632
    %v634 = vmul.f32 %v206, %v618
    %v635 = vmul.f32 %v208, %v633
    %638 = vrot.lane.b32.xlu0 %v206, 64
    %v639 = vpop.permute.xlu0 %638
    %640 = vrot.lane.b32.xlu0 %v208, 64
    %v641 = vpop.permute.xlu0 %640
    %v644 = vmul.f32 %v634, %v639
    %v645 = vmul.f32 %v635, %v641
    %648 = vrot.lane.b32.xlu0 %v282, 96
    %v649 = vpop.permute.xlu0 %648
    %650 = vrot.lane.b32.xlu0 %v283, 96
    %v651 = vpop.permute.xlu0 %650
    %656 = vrot.lane.b32.xlu0 %v594, 8
    %v657 = vpop.permute.xlu0 %656
    %658 = vrot.lane.b32.xlu0 %v595, 8
    %v659 = vpop.permute.xlu0 %658
    %664 = vrot.lane.b32.xlu0 %v644, 40
    %v665 = vpop.permute.xlu0 %664
    %666 = vrot.lane.b32.xlu0 %v645, 40
    %v667 = vpop.permute.xlu0 %666
    %v670 = vsel %vm379, %v649, %v657
    %v671 = vsel %vm379, %v651, %v659
    %vm672 = vcmask 326656
    %v673 = vsel %vm672, %v670, %v665
    %v674 = vsel %vm672, %v671, %v667
    %vm675 = vcmask 850944
    %v676 = vsel %vm675, %v673, 0.0
    %v677 = vsel %vm675, %v674, 0.0
    %v678 = vpack.c.bf16 %v677, %v676
    %v679 = vld [vmem:[%s4] sm:$0xf]
    %v680 = vld [vmem:[%s4 + $0x4] sm:$0xf]
    %v681 = vld [vmem:[%s4 + $0x8] sm:$0xf]
    %v682 = vld [vmem:[%s4 + $0xc] sm:$0xf]
    %v683 = vld [vmem:[%s4 + $0x10] sm:$0xf]
    %v684 = vld [vmem:[%s4 + $0x14] sm:$0xf]
    %v685 = vld [vmem:[%s4 + $0x18] sm:$0xf]
    %v686 = vld [vmem:[%s4 + $0x1c] sm:$0xf]
    %v687 = vld [vmem:[%s4 + $0x20] sm:$0xf]
    %v688 = vld [vmem:[%s4 + $0x24] sm:$0xf]
    %v689 = vld [vmem:[%s4 + $0x28] sm:$0xf]
    %v690 = vld [vmem:[%s4 + $0x2c] sm:$0xf]
    %v691 = vld [vmem:[%s4 + $0x30] sm:$0xf]
    %v692 = vld [vmem:[%s4 + $0x34] sm:$0xf]
    %v693 = vld [vmem:[%s4 + $0x38] sm:$0xf]
    %v694 = vld [vmem:[%s4 + $0x3c] sm:$0xf]
    %v711 = vunpack.c.l.b16 %v679
    %v712 = vunpack.c.l.b16 %v680
    %v713 = vunpack.c.l.b16 %v681
    %v714 = vunpack.c.l.b16 %v682
    %v715 = vunpack.c.l.b16 %v683
    %v716 = vunpack.c.l.b16 %v684
    %v717 = vunpack.c.l.b16 %v685
    %v718 = vunpack.c.l.b16 %v686
    %v719 = vunpack.c.l.b16 %v687
    %v720 = vunpack.c.l.b16 %v688
    %v721 = vunpack.c.l.b16 %v689
    %v722 = vunpack.c.l.b16 %v690
    %v723 = vunpack.c.l.b16 %v691
    %v724 = vunpack.c.l.b16 %v692
    %v725 = vunpack.c.l.b16 %v693
    %v726 = vunpack.c.l.b16 %v694
    %v727 = vpack.c.b16 %v712, %v711
    %v728 = vpack.c.b16 %v714, %v713
    %v729 = vpack.c.b16 %v716, %v715
    %v730 = vpack.c.b16 %v718, %v717
    %v731 = vpack.c.b16 %v720, %v719
    %v732 = vpack.c.b16 %v722, %v721
    %v733 = vpack.c.b16 %v724, %v723
    %v734 = vpack.c.b16 %v726, %v725
    %743 = vmatpush.bf16.msra.mxu0 %v734
    %744 = vmatpush.bf16.msra.mxu0 %v733
    %745 = vmatpush.bf16.msra.mxu0 %v732
    %746 = vmatpush.bf16.msra.mxu0 %v731
    %747 = vmatpush.bf16.msra.mxu0 %v730
    %748 = vmatpush.bf16.msra.mxu0 %v729
    %749 = vmatpush.bf16.msra.mxu0 %v728
    %750 = vmatpush.bf16.msra.mxu0 %v727
    %751 = vmatmul.bf16.gmra.mxu0 %v678
    %v752 = vpop.f32.mrf.mxu0
    %v753 = vadd.f32 0.0, %v752
    %v754 = vpop.f32.mrf.mxu0
    %v755 = vadd.f32 0.0, %v754
    %756 = vdwg.mxu0
    %v757 = vmul.f32 %v92, %v753
    %v758 = vmul.f32 %v93, %v755
    %v759 = vadd.f32 %v58, %v757
    %v760 = vadd.f32 %v59, %v758
    %761 = vrot.lane.b32.xlu0 %v262, 8
    %v762 = vpop.permute.xlu0 %761
    %763 = vrot.lane.b32.xlu0 %v263, 8
    %v764 = vpop.permute.xlu0 %763
    %769 = vrot.lane.b32.xlu0 %v238, 112
    %v770 = vpop.permute.xlu0 %769
    %771 = vrot.lane.b32.xlu0 %v239, 112
    %v772 = vpop.permute.xlu0 %771
    %777 = vrot.lane.b32.xlu0 %v258, 112
    %v778 = vpop.permute.xlu0 %777
    %779 = vrot.lane.b32.xlu0 %v259, 112
    %v780 = vpop.permute.xlu0 %779
    %v783 = vsel %vm379, %v649, %v762
    %v784 = vsel %vm379, %v651, %v764
    %v785 = vsel %vm325, %v783, %v770
    %v786 = vsel %vm325, %v784, %v772
    %vm787 = vcmask 195584
    %v788 = vsel %vm787, %v785, %v778
    %v789 = vsel %vm787, %v786, %v780
    %v790 = vsel %vm94, %v788, 0.0
    %v791 = vsel %vm94, %v789, 0.0
    %792 = vst [vmem:[%s7] sm:$0xff] %v790
    %793 = vst [vmem:[%s7 + $0x8] sm:$0xff] %v791
    %s794 = scalar_lea.vmem %s5, 6
    %v795 = vld [vmem:[%s794] sm:$0x3]
    %v796 = vld [vmem:[%s794 + $0x2] sm:$0x3]
    %v798 = vrot.slane %v795, 7
    %v800 = vsub.f32 %v795, %v798
    %v801 = vperm.slane %v800, 1
    %v802 = vmul.f32 %v50, %v801
    %v803 = vmul.f32 %v57, %v801
    %v804 = vperm.slane %v795, 0
    %v805 = vadd.f32 %v804, %v802
    %v806 = vadd.f32 %v804, %v803
    %v808 = vrot.slane %v796, 7
    %v810 = vsub.f32 %v796, %v808
    %v811 = vperm.slane %v810, 1
    %v812 = vmul.f32 %v50, %v811
    %v813 = vmul.f32 %v57, %v811
    %v814 = vperm.slane %v796, 0
    %v815 = vadd.f32 %v814, %v812
    %v816 = vadd.f32 %v814, %v813
    %v817 = vsel %vm94, %v759, 0.0
    %818 = vadd.xlane.f32.xlu0 %v817
    %v819 = vpop.xlane.xlu0 %818
    %v820 = vsel %vm94, %v760, 0.0
    %821 = vadd.xlane.f32.xlu0 %v820
    %v822 = vpop.xlane.xlu0 %821
    %v823 = vmul.f32 %v819, %v107
    %v824 = vmul.f32 %v822, %v107
    %v825 = vsub.f32 %v759, %v823
    %v826 = vsub.f32 %v760, %v824
    %v827 = vmul.f32 %v825, %v825
    %v828 = vmul.f32 %v826, %v826
    %v829 = vsel %vm94, %v827, 0.0
    %830 = vadd.xlane.f32.xlu0 %v829
    %v831 = vpop.xlane.xlu0 %830
    %v832 = vsel %vm94, %v828, 0.0
    %833 = vadd.xlane.f32.xlu0 %v832
    %v834 = vpop.xlane.xlu0 %833
    %v835 = vmul.f32 %v831, %v107
    %v836 = vmul.f32 %v834, %v107
    %v837 = vadd.f32 %v835, 1e-05
    %v838 = vadd.f32 %v836, 1e-05
    %v839 = vrsqrt.pop %v837
    %v840 = vmul.f32 %v839, %v837
    %v841 = vmul.f32 %v840, %v839
    %v842 = vmul.f32 0.5, %v841
    %v843 = vsub.f32 1.5, %v842
    %v844 = vmul.f32 %v839, %v843
    %vm845 = vweird.f32 %v837
    %vm846 = vweird.f32 %v839
    %vm847 = vmor %vm845, %vm846
    %v848 = vsel %vm847, %v839, %v844
    %v849 = vrsqrt.pop %v838
    %v850 = vmul.f32 %v849, %v838
    %v851 = vmul.f32 %v850, %v849
    %v852 = vmul.f32 0.5, %v851
    %v853 = vsub.f32 1.5, %v852
    %v854 = vmul.f32 %v849, %v853
    %vm855 = vweird.f32 %v838
    %vm856 = vweird.f32 %v849
    %vm857 = vmor %vm855, %vm856
    %v858 = vsel %vm857, %v849, %v854
    %v859 = vmul.f32 %v825, %v848
    %v860 = vmul.f32 %v826, %v858
    %v861 = vadd.f32 %v805, 1.0
    %v862 = vadd.f32 %v806, 1.0
    %v863 = vmul.f32 %v861, %v859
    %v864 = vmul.f32 %v862, %v860
    %v865 = vadd.f32 %v815, %v863
    %v866 = vadd.f32 %v816, %v864
    %v867 = vpack.c.bf16 %v866, %v865
    %s868 = scalar_lea.vmem [#allocation2], 48
    %v869 = vld [vmem:[%s868 + $0x8] sm:$0xf]
    %v870 = vld [vmem:[%s868 + $0x14] sm:$0xf]
    %v871 = vld [vmem:[%s868 + $0x20] sm:$0xf]
    %v872 = vld [vmem:[%s868 + $0x2c] sm:$0xf]
    %v877 = vunpack.c.l.b16 %v869
    %v878 = vunpack.c.l.b16 %v870
    %v879 = vunpack.c.l.b16 %v871
    %v880 = vunpack.c.l.b16 %v872
    %v881 = vpack.c.b16 %v878, %v877
    %v882 = vpack.c.b16 %v880, %v879
    %v886 = vsel %vm94, %v867, 0
    %888 = vmatpush.bf16.msra.mxu0 0
    %889 = vmatpush.bf16.msra.mxu0 0
    %890 = vmatpush.bf16.msra.mxu0 0
    %891 = vmatpush.bf16.msra.mxu0 0
    %892 = vmatpush.bf16.msra.mxu0 0
    %893 = vmatpush.bf16.msra.mxu0 0
    %894 = vmatpush.bf16.msra.mxu0 %v882
    %895 = vmatpush.bf16.msra.mxu0 %v881
    %896 = vmatmul.bf16.gmra.mxu0 %v886
    %v897 = vpop.f32.mrf.mxu0
    %v898 = vadd.f32 0.0, %v897
    %v899 = vpop.f32.mrf.mxu0
    %v900 = vadd.f32 0.0, %v899
    %901 = vdwg.mxu0
    %v902 = vmul.f32 %v50, %v898
    %v903 = vmul.f32 %v57, %v900
    %v904 = vadd.f32 %v902, 0.54132485
    %v905 = vadd.f32 %v903, 0.54132485
    %v906 = vmax.f32 %v904, 0.0
    %v907 = vmax.f32 %v905, 0.0
    %v908 = vand.u32 2147483647, %v904
    %v909 = vand.u32 2147483647, %v905
    %v910 = vsub.f32 0.0, %v908
    %v911 = vsub.f32 0.0, %v909
    %v912 = vmul.f32 %v910, 1.442695
    %v913 = vpow.pop %v912
    %v914 = vmul.f32 %v911, 1.442695
    %v915 = vpow.pop %v914
    %v916 = vadd.f32 %v913, 1.0
    %v917 = vadd.f32 %v915, 1.0
    %v918 = vlog2.pop %v916
    %v919 = vmul.f32 %v918, 0.6931472
    %v920 = vlog2.pop %v917
    %v921 = vmul.f32 %v920, 0.6931472
    %v922 = vadd.f32 %v906, %v919
    %v923 = vadd.f32 %v907, %v921
    %s924 = scalar_lea.vmem %s1, 16
    %v925 = vld [vmem:[%s924] sm:$0xff]
    %v926 = vld [vmem:[%s924 + $0x8] sm:$0xff]
    %v927 = vmul.f32 %v925, %v50
    %v928 = vmul.f32 %v926, %v57
    %931 = vrot.lane.b32.xlu0 %v927, 40
    %v932 = vpop.permute.xlu0 %931
    %933 = vrot.lane.b32.xlu0 %v928, 40
    %v934 = vpop.permute.xlu0 %933
    %v937 = vmul.f32 %v922, %v932
    %v938 = vmul.f32 %v923, %v934
    %941 = vrot.lane.b32.xlu0 %v937, 120
    %v942 = vpop.permute.xlu0 %941
    %943 = vrot.lane.b32.xlu0 %v938, 120
    %v944 = vpop.permute.xlu0 %943
    %v947 = vadd.f32 %v902, %v942
    %v948 = vadd.f32 %v903, %v944
    %951 = vrot.lane.b32.xlu0 %v947, 96
    %v952 = vpop.permute.xlu0 %951
    %953 = vrot.lane.b32.xlu0 %v948, 96
    %v954 = vpop.permute.xlu0 %953
    %957 = vrot.lane.b32.xlu0 %v927, 8
    %v958 = vpop.permute.xlu0 %957
    %959 = vrot.lane.b32.xlu0 %v928, 8
    %v960 = vpop.permute.xlu0 %959
    %965 = vrot.lane.b32.xlu0 %v902, 112
    %v966 = vpop.permute.xlu0 %965
    %967 = vrot.lane.b32.xlu0 %v903, 112
    %v968 = vpop.permute.xlu0 %967
    %973 = vrot.lane.b32.xlu0 %v922, 112
    %v974 = vpop.permute.xlu0 %973
    %975 = vrot.lane.b32.xlu0 %v923, 112
    %v976 = vpop.permute.xlu0 %975
    %v979 = vsel %vm379, %v952, %v958
    %v980 = vsel %vm379, %v954, %v960
    %v981 = vsel %vm325, %v979, %v966
    %v982 = vsel %vm325, %v980, %v968
    %v983 = vsel %vm787, %v981, %v974
    %v984 = vsel %vm787, %v982, %v976
    %v985 = vsel %vm94, %v983, 0.0
    %v986 = vsel %vm94, %v984, 0.0
    %s987 = scalar_lea.vmem %s7, 16
    %988 = vst [vmem:[%s987] sm:$0xff] %v985
    %989 = vst [vmem:[%s987 + $0x8] sm:$0xff] %v986
    // Predicated region
    $region34: #{hlm_generator.1} parent=1 // pred_check
      _
    $region35: #{hlm_generator.1} parent=1 // pred_check_branch
      %991 = sbr.rel (0) target = $region37
    $region36: #{hlm_generator.1} parent=1 // pred_region
      _
    $region37: #{hlm_generator.1} parent=1 // pred_fallthru
      _
    // Predicated region
    $region38: #{hlm_generator.1} parent=1 // pred_check
      _
    $region39: #{hlm_generator.1} parent=1 // pred_check_branch
      %993 = sbr.rel (0) target = $region41
    $region40: #{hlm_generator.1} parent=1 // pred_region
      _
    $region41: #{hlm_generator.1} parent=1 // pred_fallthru
      _
    %994 = vsyncpa [#allocation3], 1

</llo_original>
